<compile_context>
chip_gen: v6e
topology: v6e:2x2x1
jax: 0.10.0
libtpu: 0.0.40
codegen_flags: <defaults>
</compile_context>

<pallas_src>
import functools

import jax
import jax.numpy as jnp
from jax.experimental import pallas as pl
from jax.experimental.pallas import tpu as pltpu


def _round_up(x, m):
    return ((x + m - 1) // m) * m


# ----------------------------- Pallas kernel --------------------------------
def _make_pyramid_kernel(K, Wp, C, CKK, RPAD, LOUT):
    """Kernel specialized (via Python closure) to the static problem sizes."""

    def kernel(x_ref, w_ref, o_ref, p_ref):
        # x_ref : (C, LW)      zero-padded input, images flattened on lanes
        # w_ref : (O, RPAD)    folded pyramid weights + bias column + zero pad
        # o_ref : (O, LOUT)    lane-dense output (N images side by side)
        # p_ref : (RPAD, LOUT) VMEM scratch: in-kernel im2col patch matrix
        #
        # Bias "ones" row and zero padding rows of the patch matrix.
        p_ref[CKK:RPAD, :] = jnp.zeros((RPAD - CKK, LOUT), jnp.float32)
        p_ref[CKK:CKK + 1, :] = jnp.ones((1, LOUT), jnp.float32)
        # In-kernel im2col: each tap is a static lane-shifted read of the
        # flattened padded image(s); no wrapper-side K*K traffic inflation.
        for kh in range(K):
            for kw in range(K):
                t = kh * K + kw
                s = kh * Wp + kw
                p_ref[t * C:(t + 1) * C, :] = x_ref[:, s:s + LOUT]
        # Single MXU matmul; bias already folded in (ones row / bias column).
        o_ref[...] = jnp.dot(
            w_ref[...], p_ref[...],
            preferred_element_type=jnp.float32).astype(o_ref.dtype)

    return kernel


# ------------------------------ Wrapper --------------------------------------
@functools.partial(jax.jit, static_argnames=("kernel_levels",))
def rr_forward(x_nchw, level_weights, level_biases, *, kernel_levels):
    """Rr forward (need_decoder=False): PyramidSum of 'same' convs.

    x_nchw        : (N, C, H, W) float32
    level_weights : list of (O, C, k_i, k_i) float32, k_i = 2*(i+1)-1
    level_biases  : list of (O,) float32
    returns       : (N, O, H, W) float32
    """
    N, C, H, W = x_nchw.shape
    O = level_weights[0].shape[0]
    K = 2 * kernel_levels - 1
    pad = (K - 1) // 2
    Hp, Wp = H + 2 * pad, W + 2 * pad
    CKK = C * K * K

    # Lane layout: each image owns a 128-aligned region of LPAD lanes holding
    # its flattened padded image; LW adds headroom for the largest tap shift.
    LPAD = _round_up(Hp * Wp, 128)                # 512 for 16x16 / K=5
    LOUT = N * LPAD                               # 1024 lanes (8 full tiles)
    s_max = (K - 1) * Wp + (K - 1)                # 84
    LW = LOUT + _round_up(max(s_max, 1), 128)     # 1152
    RPAD = max(128, _round_up(CKK + 1, 8))        # one full 128 MXU tile

    # --- fold all pyramid levels into one centered KxK kernel (exact) --------
    w_combined = jnp.zeros((O, C, K, K), jnp.float32)
    b_combined = jnp.zeros((O,), jnp.float32)
    for i in range(kernel_levels):
        k_i = 2 * (i + 1) - 1
        off = (K - k_i) // 2
        w_combined = w_combined.at[:, :, off:off + k_i, off:off + k_i].add(
            level_weights[i])
        b_combined = b_combined + level_biases[i]
    # Patch-row order inside the kernel is (kh, kw) major, c minor.
    w_core = w_combined.transpose(0, 2, 3, 1).reshape(O, CKK)
    w_mat = jnp.concatenate(
        [w_core, b_combined[:, None],
         jnp.zeros((O, RPAD - CKK - 1), jnp.float32)], axis=1)   # (O, RPAD)

    # --- input layout: zero-pad, flatten spatial on lanes, fold batch --------
    x_pad = jnp.pad(x_nchw, ((0, 0), (0, 0), (pad, pad), (pad, pad)))
    x_flat = x_pad.reshape(N, C, Hp * Wp)
    x_flat = jnp.pad(x_flat, ((0, 0), (0, 0), (0, LPAD - Hp * Wp)))
    x_wide = x_flat.transpose(1, 0, 2).reshape(C, N * LPAD)
    x_wide = jnp.pad(x_wide, ((0, 0), (0, LW - N * LPAD)))       # (C, LW)

    kernel = _make_pyramid_kernel(K, Wp, C, CKK, RPAD, LOUT)

    cost = pl.CostEstimate(
        flops=2 * O * RPAD * LOUT,
        transcendentals=0,
        bytes_accessed=4 * (C * LW + O * RPAD + O * LOUT),
    )

    out_wide = pl.pallas_call(
        kernel,
        out_shape=jax.ShapeDtypeStruct((O, LOUT), jnp.float32),
        grid_spec=pltpu.PrefetchScalarGridSpec(
            num_scalar_prefetch=0,
            grid=(1,),
            in_specs=[
                pl.BlockSpec((C, LW), lambda i: (0, 0)),
                pl.BlockSpec((O, RPAD), lambda i: (0, 0)),
            ],
            out_specs=pl.BlockSpec((O, LOUT), lambda i: (0, 0)),
            scratch_shapes=[pltpu.VMEM((RPAD, LOUT), jnp.float32)],
        ),
        compiler_params=pltpu.CompilerParams(
            dimension_semantics=("arbitrary",)),
        cost_estimate=cost,
    )(x_wide, w_mat)

    # Undo the lane layout: (O, N, LPAD) -> valid HxW window -> NCHW.
    out = out_wide.reshape(O, N, LPAD)[:, :, :H * Wp]
    out = out.reshape(O, N, H, Wp)[:, :, :, :W]
    return jnp.transpose(out, (1, 0, 2, 3))


# --------------------------- Reference (pure JAX) ----------------------------
def _reference(x_nchw, level_weights, level_biases, kernel_levels):
    out = None
    for i in range(kernel_levels):
        p = i
        y = jax.lax.conv_general_dilated(
            x_nchw, level_weights[i],
            window_strides=(1, 1),
            padding=((p, p), (p, p)),
            dimension_numbers=("NCHW", "OIHW", "NCHW"),
        ) + level_biases[i][None, :, None, None]
        out = y if out is None else out + y
    return out


# ------------------------------------ main -----------------------------------
if __name__ == "__main__":
    # Config implied by the module: out_channels=3, kernels 1,3,5 (3 levels).
    N, C_IN, HH, WW = 2, 4, 16, 16
    OUT_CH = 3
    KERNEL_LEVELS = 3

    key = jax.random.PRNGKey(0)
    kx, kparam = jax.random.split(key)
    x = jax.random.normal(kx, (N, C_IN, HH, WW), dtype=jnp.float32)

    # Deterministic parameter init (Conv2d-style: weight (O, C, k, k), bias (O,)).
    level_weights, level_biases = [], []
    for i in range(KERNEL_LEVELS):
        k_i = 2 * (i + 1) - 1
        kparam, kw_i, kb_i = jax.random.split(kparam, 3)
        fan_in = C_IN * k_i * k_i
        bound = 1.0 / jnp.sqrt(fan_in)
        level_weights.append(jax.random.uniform(
            kw_i, (OUT_CH, C_IN, k_i, k_i), jnp.float32, -bound, bound))
        level_biases.append(jax.random.uniform(
            kb_i, (OUT_CH,), jnp.float32, -bound, bound))

    out = rr_forward(x, level_weights, level_biases,
                     kernel_levels=KERNEL_LEVELS)
    out = jax.block_until_ready(out)

    ref = _reference(x, level_weights, level_biases, KERNEL_LEVELS)
    assert out.shape == (N, OUT_CH, HH, WW), out.shape
    assert jnp.allclose(out, ref, atol=1e-4, rtol=1e-4), \
        float(jnp.max(jnp.abs(out - ref)))

    print("KERNEL_OK")
</pallas_src>

<mosaic_0001>
module attributes {stable_mosaic.version = 11 : i64} {
  func.func @kernel(%arg0: i32, %arg1: memref<4x1152xf32, #tpu.memory_space<vmem>>, %arg2: memref<3x128xf32, #tpu.memory_space<vmem>>, %arg3: memref<3x1024xf32, #tpu.memory_space<vmem>>, %arg4: memref<128x1024xf32, #tpu.memory_space<vmem>>) attributes {dimension_semantics = [#tpu.dimension_semantics<arbitrary>], iteration_bounds = array<i64: 1>, scalar_prefetch = 0 : i64, scratch_operands = 1 : i64, tpu.core_type = #tpu.core_type<tc>, window_params = [{pipeline_mode = #tpu.pipeline_mode<synchronous>, transform_indices = @transform_0, window_bounds = array<i64: 4, 1152>}, {pipeline_mode = #tpu.pipeline_mode<synchronous>, transform_indices = @transform_1, window_bounds = array<i64: 3, 128>}, {pipeline_mode = #tpu.pipeline_mode<synchronous>, transform_indices = @transform_2, window_bounds = array<i64: 3, 1024>}]} {
    %cst = arith.constant 0.000000e+00 : f32
    %0 = vector.broadcast %cst : f32 to vector<28x1024xf32>
    %c100 = arith.constant 100 : index
    %c0 = arith.constant 0 : index
    %1 = vector.load %arg4[%c100, %c0] : memref<128x1024xf32, #tpu.memory_space<vmem>>, vector<28x1024xf32>
    tpu.vector_store %arg4[%c100, %c0], %0 {strides = array<i32>} : memref<128x1024xf32, #tpu.memory_space<vmem>>, vector<28x1024xf32>,
    %cst_0 = arith.constant 1.000000e+00 : f32
    %2 = vector.broadcast %cst_0 : f32 to vector<1x1024xf32>
    %c100_1 = arith.constant 100 : index
    %c0_2 = arith.constant 0 : index
    %3 = vector.load %arg4[%c100_1, %c0_2] : memref<128x1024xf32, #tpu.memory_space<vmem>>, vector<1x1024xf32>
    tpu.vector_store %arg4[%c100_1, %c0_2], %2 {strides = array<i32>} : memref<128x1024xf32, #tpu.memory_space<vmem>>, vector<1x1024xf32>,
    %c0_3 = arith.constant 0 : index
    %c0_4 = arith.constant 0 : index
    %4 = vector.load %arg1[%c0_3, %c0_4] : memref<4x1152xf32, #tpu.memory_space<vmem>>, vector<4x1024xf32>
    %c0_5 = arith.constant 0 : index
    %c0_6 = arith.constant 0 : index
    %5 = vector.load %arg4[%c0_5, %c0_6] : memref<128x1024xf32, #tpu.memory_space<vmem>>, vector<4x1024xf32>
    tpu.vector_store %arg4[%c0_5, %c0_6], %4 {strides = array<i32>} : memref<128x1024xf32, #tpu.memory_space<vmem>>, vector<4x1024xf32>,
    %c0_7 = arith.constant 0 : index
    %c1 = arith.constant 1 : index
    %6 = vector.load %arg1[%c0_7, %c1] : memref<4x1152xf32, #tpu.memory_space<vmem>>, vector<4x1024xf32>
    %c4 = arith.constant 4 : index
    %c0_8 = arith.constant 0 : index
    %7 = vector.load %arg4[%c4, %c0_8] : memref<128x1024xf32, #tpu.memory_space<vmem>>, vector<4x1024xf32>
    tpu.vector_store %arg4[%c4, %c0_8], %6 {strides = array<i32>} : memref<128x1024xf32, #tpu.memory_space<vmem>>, vector<4x1024xf32>,
    %c0_9 = arith.constant 0 : index
    %c2 = arith.constant 2 : index
    %8 = vector.load %arg1[%c0_9, %c2] : memref<4x1152xf32, #tpu.memory_space<vmem>>, vector<4x1024xf32>
    %c8 = arith.constant 8 : index
    %c0_10 = arith.constant 0 : index
    %9 = vector.load %arg4[%c8, %c0_10] : memref<128x1024xf32, #tpu.memory_space<vmem>>, vector<4x1024xf32>
    tpu.vector_store %arg4[%c8, %c0_10], %8 {strides = array<i32>} : memref<128x1024xf32, #tpu.memory_space<vmem>>, vector<4x1024xf32>,
    %c0_11 = arith.constant 0 : index
    %c3 = arith.constant 3 : index
    %10 = vector.load %arg1[%c0_11, %c3] : memref<4x1152xf32, #tpu.memory_space<vmem>>, vector<4x1024xf32>
    %c12 = arith.constant 12 : index
    %c0_12 = arith.constant 0 : index
    %11 = vector.load %arg4[%c12, %c0_12] : memref<128x1024xf32, #tpu.memory_space<vmem>>, vector<4x1024xf32>
    tpu.vector_store %arg4[%c12, %c0_12], %10 {strides = array<i32>} : memref<128x1024xf32, #tpu.memory_space<vmem>>, vector<4x1024xf32>,
    %c0_13 = arith.constant 0 : index
    %c4_14 = arith.constant 4 : index
    %12 = vector.load %arg1[%c0_13, %c4_14] : memref<4x1152xf32, #tpu.memory_space<vmem>>, vector<4x1024xf32>
    %c16 = arith.constant 16 : index
    %c0_15 = arith.constant 0 : index
    %13 = vector.load %arg4[%c16, %c0_15] : memref<128x1024xf32, #tpu.memory_space<vmem>>, vector<4x1024xf32>
    tpu.vector_store %arg4[%c16, %c0_15], %12 {strides = array<i32>} : memref<128x1024xf32, #tpu.memory_space<vmem>>, vector<4x1024xf32>,
    %c0_16 = arith.constant 0 : index
    %c20 = arith.constant 20 : index
    %14 = vector.load %arg1[%c0_16, %c20] : memref<4x1152xf32, #tpu.memory_space<vmem>>, vector<4x1024xf32>
    %c20_17 = arith.constant 20 : index
    %c0_18 = arith.constant 0 : index
    %15 = vector.load %arg4[%c20_17, %c0_18] : memref<128x1024xf32, #tpu.memory_space<vmem>>, vector<4x1024xf32>
    tpu.vector_store %arg4[%c20_17, %c0_18], %14 {strides = array<i32>} : memref<128x1024xf32, #tpu.memory_space<vmem>>, vector<4x1024xf32>,
    %c0_19 = arith.constant 0 : index
    %c21 = arith.constant 21 : index
    %16 = vector.load %arg1[%c0_19, %c21] : memref<4x1152xf32, #tpu.memory_space<vmem>>, vector<4x1024xf32>
    %c24 = arith.constant 24 : index
    %c0_20 = arith.constant 0 : index
    %17 = vector.load %arg4[%c24, %c0_20] : memref<128x1024xf32, #tpu.memory_space<vmem>>, vector<4x1024xf32>
    tpu.vector_store %arg4[%c24, %c0_20], %16 {strides = array<i32>} : memref<128x1024xf32, #tpu.memory_space<vmem>>, vector<4x1024xf32>,
    %c0_21 = arith.constant 0 : index
    %c22 = arith.constant 22 : index
    %18 = vector.load %arg1[%c0_21, %c22] : memref<4x1152xf32, #tpu.memory_space<vmem>>, vector<4x1024xf32>
    %c28 = arith.constant 28 : index
    %c0_22 = arith.constant 0 : index
    %19 = vector.load %arg4[%c28, %c0_22] : memref<128x1024xf32, #tpu.memory_space<vmem>>, vector<4x1024xf32>
    tpu.vector_store %arg4[%c28, %c0_22], %18 {strides = array<i32>} : memref<128x1024xf32, #tpu.memory_space<vmem>>, vector<4x1024xf32>,
    %c0_23 = arith.constant 0 : index
    %c23 = arith.constant 23 : index
    %20 = vector.load %arg1[%c0_23, %c23] : memref<4x1152xf32, #tpu.memory_space<vmem>>, vector<4x1024xf32>
    %c32 = arith.constant 32 : index
    %c0_24 = arith.constant 0 : index
    %21 = vector.load %arg4[%c32, %c0_24] : memref<128x1024xf32, #tpu.memory_space<vmem>>, vector<4x1024xf32>
    tpu.vector_store %arg4[%c32, %c0_24], %20 {strides = array<i32>} : memref<128x1024xf32, #tpu.memory_space<vmem>>, vector<4x1024xf32>,
    %c0_25 = arith.constant 0 : index
    %c24_26 = arith.constant 24 : index
    %22 = vector.load %arg1[%c0_25, %c24_26] : memref<4x1152xf32, #tpu.memory_space<vmem>>, vector<4x1024xf32>
    %c36 = arith.constant 36 : index
    %c0_27 = arith.constant 0 : index
    %23 = vector.load %arg4[%c36, %c0_27] : memref<128x1024xf32, #tpu.memory_space<vmem>>, vector<4x1024xf32>
    tpu.vector_store %arg4[%c36, %c0_27], %22 {strides = array<i32>} : memref<128x1024xf32, #tpu.memory_space<vmem>>, vector<4x1024xf32>,
    %c0_28 = arith.constant 0 : index
    %c40 = arith.constant 40 : index
    %24 = vector.load %arg1[%c0_28, %c40] : memref<4x1152xf32, #tpu.memory_space<vmem>>, vector<4x1024xf32>
    %c40_29 = arith.constant 40 : index
    %c0_30 = arith.constant 0 : index
    %25 = vector.load %arg4[%c40_29, %c0_30] : memref<128x1024xf32, #tpu.memory_space<vmem>>, vector<4x1024xf32>
    tpu.vector_store %arg4[%c40_29, %c0_30], %24 {strides = array<i32>} : memref<128x1024xf32, #tpu.memory_space<vmem>>, vector<4x1024xf32>,
    %c0_31 = arith.constant 0 : index
    %c41 = arith.constant 41 : index
    %26 = vector.load %arg1[%c0_31, %c41] : memref<4x1152xf32, #tpu.memory_space<vmem>>, vector<4x1024xf32>
    %c44 = arith.constant 44 : index
    %c0_32 = arith.constant 0 : index
    %27 = vector.load %arg4[%c44, %c0_32] : memref<128x1024xf32, #tpu.memory_space<vmem>>, vector<4x1024xf32>
    tpu.vector_store %arg4[%c44, %c0_32], %26 {strides = array<i32>} : memref<128x1024xf32, #tpu.memory_space<vmem>>, vector<4x1024xf32>,
    %c0_33 = arith.constant 0 : index
    %c42 = arith.constant 42 : index
    %28 = vector.load %arg1[%c0_33, %c42] : memref<4x1152xf32, #tpu.memory_space<vmem>>, vector<4x1024xf32>
    %c48 = arith.constant 48 : index
    %c0_34 = arith.constant 0 : index
    %29 = vector.load %arg4[%c48, %c0_34] : memref<128x1024xf32, #tpu.memory_space<vmem>>, vector<4x1024xf32>
    tpu.vector_store %arg4[%c48, %c0_34], %28 {strides = array<i32>} : memref<128x1024xf32, #tpu.memory_space<vmem>>, vector<4x1024xf32>,
    %c0_35 = arith.constant 0 : index
    %c43 = arith.constant 43 : index
    %30 = vector.load %arg1[%c0_35, %c43] : memref<4x1152xf32, #tpu.memory_space<vmem>>, vector<4x1024xf32>
    %c52 = arith.constant 52 : index
    %c0_36 = arith.constant 0 : index
    %31 = vector.load %arg4[%c52, %c0_36] : memref<128x1024xf32, #tpu.memory_space<vmem>>, vector<4x1024xf32>
    tpu.vector_store %arg4[%c52, %c0_36], %30 {strides = array<i32>} : memref<128x1024xf32, #tpu.memory_space<vmem>>, vector<4x1024xf32>,
    %c0_37 = arith.constant 0 : index
    %c44_38 = arith.constant 44 : index
    %32 = vector.load %arg1[%c0_37, %c44_38] : memref<4x1152xf32, #tpu.memory_space<vmem>>, vector<4x1024xf32>
    %c56 = arith.constant 56 : index
    %c0_39 = arith.constant 0 : index
    %33 = vector.load %arg4[%c56, %c0_39] : memref<128x1024xf32, #tpu.memory_space<vmem>>, vector<4x1024xf32>
    tpu.vector_store %arg4[%c56, %c0_39], %32 {strides = array<i32>} : memref<128x1024xf32, #tpu.memory_space<vmem>>, vector<4x1024xf32>,
    %c0_40 = arith.constant 0 : index
    %c60 = arith.constant 60 : index
    %34 = vector.load %arg1[%c0_40, %c60] : memref<4x1152xf32, #tpu.memory_space<vmem>>, vector<4x1024xf32>
    %c60_41 = arith.constant 60 : index
    %c0_42 = arith.constant 0 : index
    %35 = vector.load %arg4[%c60_41, %c0_42] : memref<128x1024xf32, #tpu.memory_space<vmem>>, vector<4x1024xf32>
    tpu.vector_store %arg4[%c60_41, %c0_42], %34 {strides = array<i32>} : memref<128x1024xf32, #tpu.memory_space<vmem>>, vector<4x1024xf32>,
    %c0_43 = arith.constant 0 : index
    %c61 = arith.constant 61 : index
    %36 = vector.load %arg1[%c0_43, %c61] : memref<4x1152xf32, #tpu.memory_space<vmem>>, vector<4x1024xf32>
    %c64 = arith.constant 64 : index
    %c0_44 = arith.constant 0 : index
    %37 = vector.load %arg4[%c64, %c0_44] : memref<128x1024xf32, #tpu.memory_space<vmem>>, vector<4x1024xf32>
    tpu.vector_store %arg4[%c64, %c0_44], %36 {strides = array<i32>} : memref<128x1024xf32, #tpu.memory_space<vmem>>, vector<4x1024xf32>,
    %c0_45 = arith.constant 0 : index
    %c62 = arith.constant 62 : index
    %38 = vector.load %arg1[%c0_45, %c62] : memref<4x1152xf32, #tpu.memory_space<vmem>>, vector<4x1024xf32>
    %c68 = arith.constant 68 : index
    %c0_46 = arith.constant 0 : index
    %39 = vector.load %arg4[%c68, %c0_46] : memref<128x1024xf32, #tpu.memory_space<vmem>>, vector<4x1024xf32>
    tpu.vector_store %arg4[%c68, %c0_46], %38 {strides = array<i32>} : memref<128x1024xf32, #tpu.memory_space<vmem>>, vector<4x1024xf32>,
    %c0_47 = arith.constant 0 : index
    %c63 = arith.constant 63 : index
    %40 = vector.load %arg1[%c0_47, %c63] : memref<4x1152xf32, #tpu.memory_space<vmem>>, vector<4x1024xf32>
    %c72 = arith.constant 72 : index
    %c0_48 = arith.constant 0 : index
    %41 = vector.load %arg4[%c72, %c0_48] : memref<128x1024xf32, #tpu.memory_space<vmem>>, vector<4x1024xf32>
    tpu.vector_store %arg4[%c72, %c0_48], %40 {strides = array<i32>} : memref<128x1024xf32, #tpu.memory_space<vmem>>, vector<4x1024xf32>,
    %c0_49 = arith.constant 0 : index
    %c64_50 = arith.constant 64 : index
    %42 = vector.load %arg1[%c0_49, %c64_50] : memref<4x1152xf32, #tpu.memory_space<vmem>>, vector<4x1024xf32>
    %c76 = arith.constant 76 : index
    %c0_51 = arith.constant 0 : index
    %43 = vector.load %arg4[%c76, %c0_51] : memref<128x1024xf32, #tpu.memory_space<vmem>>, vector<4x1024xf32>
    tpu.vector_store %arg4[%c76, %c0_51], %42 {strides = array<i32>} : memref<128x1024xf32, #tpu.memory_space<vmem>>, vector<4x1024xf32>,
    %c0_52 = arith.constant 0 : index
    %c80 = arith.constant 80 : index
    %44 = vector.load %arg1[%c0_52, %c80] : memref<4x1152xf32, #tpu.memory_space<vmem>>, vector<4x1024xf32>
    %c80_53 = arith.constant 80 : index
    %c0_54 = arith.constant 0 : index
    %45 = vector.load %arg4[%c80_53, %c0_54] : memref<128x1024xf32, #tpu.memory_space<vmem>>, vector<4x1024xf32>
    tpu.vector_store %arg4[%c80_53, %c0_54], %44 {strides = array<i32>} : memref<128x1024xf32, #tpu.memory_space<vmem>>, vector<4x1024xf32>,
    %c0_55 = arith.constant 0 : index
    %c81 = arith.constant 81 : index
    %46 = vector.load %arg1[%c0_55, %c81] : memref<4x1152xf32, #tpu.memory_space<vmem>>, vector<4x1024xf32>
    %c84 = arith.constant 84 : index
    %c0_56 = arith.constant 0 : index
    %47 = vector.load %arg4[%c84, %c0_56] : memref<128x1024xf32, #tpu.memory_space<vmem>>, vector<4x1024xf32>
    tpu.vector_store %arg4[%c84, %c0_56], %46 {strides = array<i32>} : memref<128x1024xf32, #tpu.memory_space<vmem>>, vector<4x1024xf32>,
    %c0_57 = arith.constant 0 : index
    %c82 = arith.constant 82 : index
    %48 = vector.load %arg1[%c0_57, %c82] : memref<4x1152xf32, #tpu.memory_space<vmem>>, vector<4x1024xf32>
    %c88 = arith.constant 88 : index
    %c0_58 = arith.constant 0 : index
    %49 = vector.load %arg4[%c88, %c0_58] : memref<128x1024xf32, #tpu.memory_space<vmem>>, vector<4x1024xf32>
    tpu.vector_store %arg4[%c88, %c0_58], %48 {strides = array<i32>} : memref<128x1024xf32, #tpu.memory_space<vmem>>, vector<4x1024xf32>,
    %c0_59 = arith.constant 0 : index
    %c83 = arith.constant 83 : index
    %50 = vector.load %arg1[%c0_59, %c83] : memref<4x1152xf32, #tpu.memory_space<vmem>>, vector<4x1024xf32>
    %c92 = arith.constant 92 : index
    %c0_60 = arith.constant 0 : index
    %51 = vector.load %arg4[%c92, %c0_60] : memref<128x1024xf32, #tpu.memory_space<vmem>>, vector<4x1024xf32>
    tpu.vector_store %arg4[%c92, %c0_60], %50 {strides = array<i32>} : memref<128x1024xf32, #tpu.memory_space<vmem>>, vector<4x1024xf32>,
    %c0_61 = arith.constant 0 : index
    %c84_62 = arith.constant 84 : index
    %52 = vector.load %arg1[%c0_61, %c84_62] : memref<4x1152xf32, #tpu.memory_space<vmem>>, vector<4x1024xf32>
    %c96 = arith.constant 96 : index
    %c0_63 = arith.constant 0 : index
    %53 = vector.load %arg4[%c96, %c0_63] : memref<128x1024xf32, #tpu.memory_space<vmem>>, vector<4x1024xf32>
    tpu.vector_store %arg4[%c96, %c0_63], %52 {strides = array<i32>} : memref<128x1024xf32, #tpu.memory_space<vmem>>, vector<4x1024xf32>,
    %c0_64 = arith.constant 0 : index
    %c0_65 = arith.constant 0 : index
    %54 = vector.load %arg2[%c0_64, %c0_65] : memref<3x128xf32, #tpu.memory_space<vmem>>, vector<3x128xf32>
    %c0_66 = arith.constant 0 : index
    %c0_67 = arith.constant 0 : index
    %55 = vector.load %arg4[%c0_66, %c0_67] : memref<128x1024xf32, #tpu.memory_space<vmem>>, vector<128x1024xf32>
    %cst_68 = arith.constant dense<0.000000e+00> : vector<3x1024xf32>
    %56 = tpu.matmul %54, %55, %cst_68 {dimension_numbers = #tpu.dot_dimension_numbers<[1], [0], [0], [1], [0, 0, 1, 1], [], []>} : vector<3x128xf32>, vector<128x1024xf32>, vector<3x1024xf32> -> vector<3x1024xf32>
    %c0_69 = arith.constant 0 : index
    %c0_70 = arith.constant 0 : index
    %57 = vector.load %arg3[%c0_69, %c0_70] : memref<3x1024xf32, #tpu.memory_space<vmem>>, vector<3x1024xf32>
    tpu.vector_store %arg3[%c0_69, %c0_70], %56 {strides = array<i32>} : memref<3x1024xf32, #tpu.memory_space<vmem>>, vector<3x1024xf32>,
    return
  }
  func.func @transform_0(%arg0: i32) -> (i32, i32) {
    %c0_i32 = arith.constant 0 : i32
    %c0_i32_0 = arith.constant 0 : i32
    %c0_i32_1 = arith.constant 0 : i32
    return %c0_i32, %c0_i32_0 : i32, i32
  }
  func.func @transform_1(%arg0: i32) -> (i32, i32) {
    %c0_i32 = arith.constant 0 : i32
    %c0_i32_0 = arith.constant 0 : i32
    %c0_i32_1 = arith.constant 0 : i32
    return %c0_i32, %c0_i32_0 : i32, i32
  }
  func.func @transform_2(%arg0: i32) -> (i32, i32) {
    %c0_i32 = arith.constant 0 : i32
    %c0_i32_0 = arith.constant 0 : i32
    %c0_i32_1 = arith.constant 0 : i32
    return %c0_i32, %c0_i32_0 : i32, i32
  }
}

</mosaic_0001>

<llo_original>
// kernel: rr_forward.1
$region0: #{rr_forward.1}
  #allocation0 [shape = 'u32[]', space=smem, size = 0x4, offset = 0x4, fixed_abs, tag = 'smem constant byte address 0x4 - core index']
  #allocation1 [shape = 'u32[144,128]{1,0:T(1,128)}', space=vmem, size = 0x12000, scoped, tag = 'internal scratch']
  #allocation2 [shape = 'f32[128,1024]{1,0:T(8,128)}', space=vmem, size = 0x80000, scoped, tag = 'scratch operand']
  %s0 = inlined_call_operand.vmem [shape: f32[4,1152], index: 0, kind: input, shape index: {}]
  %s1 = inlined_call_operand.vmem [shape: f32[3,128], index: 1, kind: input, shape index: {}]
  %s2 = inlined_call_operand.vmem [shape: f32[3,1024], index: 2, kind: output, shape index: {}]
  %s3 = sld [smem:[#allocation0]]
  $region18: #{rr_forward.1} parent=0
    _
  %s5 = ssub.s32 1, %s3
  %s6 = scalar_select 0, %s5, %s3
  // Predicated region
  $region2: #{rr_forward.1} parent=0 // pred_check
    _
  $region3: #{rr_forward.1} parent=0 // pred_check_branch
    %8 = sbr.rel (0) target = $region5
  $region4: #{rr_forward.1} parent=0 // pred_region
    _
  $region5: #{rr_forward.1} parent=0 // pred_fallthru
    _
  // Predicated region
  $region6: #{rr_forward.1} parent=0 // pred_check
    _
  $region7: #{rr_forward.1} parent=0 // pred_check_branch
    %10 = sbr.rel (0) target = $region9
  $region8: #{rr_forward.1} parent=0 // pred_region
    _
  $region9: #{rr_forward.1} parent=0 // pred_fallthru
    _
  %11 = vst [vmem:[#allocation2 + $0x300] sm:$0xf0] 0.0
  %12 = vst [vmem:[#allocation2 + $0x308] sm:$0xf0] 0.0
  %13 = vst [vmem:[#allocation2 + $0x310] sm:$0xf0] 0.0
  %14 = vst [vmem:[#allocation2 + $0x318] sm:$0xf0] 0.0
  %15 = vst [vmem:[#allocation2 + $0x320] sm:$0xf0] 0.0
  %16 = vst [vmem:[#allocation2 + $0x328] sm:$0xf0] 0.0
  %17 = vst [vmem:[#allocation2 + $0x330] sm:$0xf0] 0.0
  %18 = vst [vmem:[#allocation2 + $0x338] sm:$0xf0] 0.0
  %19 = vst [vmem:[#allocation2 + $0x340] sm:$0xff] 0.0
  %20 = vst [vmem:[#allocation2 + $0x348] sm:$0xff] 0.0
  %21 = vst [vmem:[#allocation2 + $0x350] sm:$0xff] 0.0
  %22 = vst [vmem:[#allocation2 + $0x358] sm:$0xff] 0.0
  %23 = vst [vmem:[#allocation2 + $0x360] sm:$0xff] 0.0
  %24 = vst [vmem:[#allocation2 + $0x368] sm:$0xff] 0.0
  %25 = vst [vmem:[#allocation2 + $0x370] sm:$0xff] 0.0
  %26 = vst [vmem:[#allocation2 + $0x378] sm:$0xff] 0.0
  %27 = vst [vmem:[#allocation2 + $0x380] sm:$0xff] 0.0
  %28 = vst [vmem:[#allocation2 + $0x388] sm:$0xff] 0.0
  %29 = vst [vmem:[#allocation2 + $0x390] sm:$0xff] 0.0
  %30 = vst [vmem:[#allocation2 + $0x398] sm:$0xff] 0.0
  %31 = vst [vmem:[#allocation2 + $0x3a0] sm:$0xff] 0.0
  %32 = vst [vmem:[#allocation2 + $0x3a8] sm:$0xff] 0.0
  %33 = vst [vmem:[#allocation2 + $0x3b0] sm:$0xff] 0.0
  %34 = vst [vmem:[#allocation2 + $0x3b8] sm:$0xff] 0.0
  %35 = vst [vmem:[#allocation2 + $0x3c0] sm:$0xff] 0.0
  %36 = vst [vmem:[#allocation2 + $0x3c8] sm:$0xff] 0.0
  %37 = vst [vmem:[#allocation2 + $0x3d0] sm:$0xff] 0.0
  %38 = vst [vmem:[#allocation2 + $0x3d8] sm:$0xff] 0.0
  %39 = vst [vmem:[#allocation2 + $0x3e0] sm:$0xff] 0.0
  %40 = vst [vmem:[#allocation2 + $0x3e8] sm:$0xff] 0.0
  %41 = vst [vmem:[#allocation2 + $0x3f0] sm:$0xff] 0.0
  %42 = vst [vmem:[#allocation2 + $0x3f8] sm:$0xff] 0.0
  %s43 = scalar_lea.vmem [#allocation2], 772
  %44 = vst [vmem:[%s43] ss:$8 sm:$0xf] 1.0
  %45 = vst [vmem:[%s43] ss:$8 sm:$0xf0] 1.0
  %v46 = vld [vmem:[%s0] sm:$0xff]
  %v47 = vld [vmem:[%s0 + $0x8] sm:$0xff]
  %v48 = vld [vmem:[%s0 + $0x10] sm:$0xff]
  %v49 = vld [vmem:[%s0 + $0x18] sm:$0xff]
  %v54 = vcombine.high %v46, %v46
  %v55 = vcombine.high %v47, %v47
  %v56 = vcombine.high %v48, %v48
  %v57 = vcombine.high %v49, %v49
  %62 = vst [vmem:[#allocation2] sm:$0xf] %v46
  %63 = vst [vmem:[#allocation2 + $0x8] sm:$0xf] %v54
  %64 = vst [vmem:[#allocation2 + $0x10] sm:$0xf] %v47
  %65 = vst [vmem:[#allocation2 + $0x18] sm:$0xf] %v55
  %66 = vst [vmem:[#allocation2 + $0x20] sm:$0xf] %v48
  %67 = vst [vmem:[#allocation2 + $0x28] sm:$0xf] %v56
  %68 = vst [vmem:[#allocation2 + $0x30] sm:$0xf] %v49
  %69 = vst [vmem:[#allocation2 + $0x38] sm:$0xf] %v57
  %v70 = vld [vmem:[%s0] sm:$0xff]
  %v71 = vld [vmem:[%s0 + $0x8] sm:$0xff]
  %v72 = vld [vmem:[%s0 + $0x10] sm:$0xff]
  %v73 = vld [vmem:[%s0 + $0x18] sm:$0xff]
  %v74 = vld [vmem:[%s0 + $0x20] sm:$0xf]
  %v80 = vcombine.low %v70, %v70
  %v81 = vcombine.low %v71, %v71
  %v82 = vcombine.low %v72, %v72
  %v83 = vcombine.low %v73, %v73
  %v84 = vcombine.low %v74, %v74
  %85 = vrot.lane.b32.xlu0 %v80, 127
  %v86 = vpop.permute.xlu0 %85
  %87 = vrot.lane.b32.xlu0 %v70, 127
  %v88 = vpop.permute.xlu0 %87
  %89 = vrot.lane.b32.xlu0 %v81, 127
  %v90 = vpop.permute.xlu0 %89
  %91 = vrot.lane.b32.xlu0 %v71, 127
  %v92 = vpop.permute.xlu0 %91
  %93 = vrot.lane.b32.xlu0 %v82, 127
  %v94 = vpop.permute.xlu0 %93
  %95 = vrot.lane.b32.xlu0 %v72, 127
  %v96 = vpop.permute.xlu0 %95
  %97 = vrot.lane.b32.xlu0 %v83, 127
  %v98 = vpop.permute.xlu0 %97
  %99 = vrot.lane.b32.xlu0 %v73, 127
  %v100 = vpop.permute.xlu0 %99
  %101 = vrot.lane.b32.xlu0 %v84, 127
  %v102 = vpop.permute.xlu0 %101
  %vm103 = vcmask 1039360
  %v104 = vsel %vm103, %v86, %v88
  %v105 = vsel %vm103, %v88, %v90
  %v106 = vsel %vm103, %v90, %v92
  %v107 = vsel %vm103, %v92, %v94
  %v108 = vsel %vm103, %v94, %v96
  %v109 = vsel %vm103, %v96, %v98
  %v110 = vsel %vm103, %v98, %v100
  %v111 = vsel %vm103, %v100, %v102
  %120 = vst [vmem:[#allocation2] sm:$0xf0] %v104
  %121 = vst [vmem:[#allocation2 + $0x8] sm:$0xf0] %v105
  %122 = vst [vmem:[#allocation2 + $0x10] sm:$0xf0] %v106
  %123 = vst [vmem:[#allocation2 + $0x18] sm:$0xf0] %v107
  %124 = vst [vmem:[#allocation2 + $0x20] sm:$0xf0] %v108
  %125 = vst [vmem:[#allocation2 + $0x28] sm:$0xf0] %v109
  %126 = vst [vmem:[#allocation2 + $0x30] sm:$0xf0] %v110
  %127 = vst [vmem:[#allocation2 + $0x38] sm:$0xf0] %v111
  %v128 = vld [vmem:[%s0] sm:$0xff]
  %v129 = vld [vmem:[%s0 + $0x8] sm:$0xff]
  %v130 = vld [vmem:[%s0 + $0x10] sm:$0xff]
  %v131 = vld [vmem:[%s0 + $0x18] sm:$0xff]
  %v132 = vld [vmem:[%s0 + $0x20] sm:$0xf]
  %v138 = vcombine.high %v128, %v128
  %v139 = vcombine.high %v129, %v129
  %v140 = vcombine.high %v130, %v130
  %v141 = vcombine.high %v131, %v131
  %142 = vrot.lane.b32.xlu0 %v128, 126
  %v143 = vpop.permute.xlu0 %142
  %144 = vrot.lane.b32.xlu0 %v138, 126
  %v145 = vpop.permute.xlu0 %144
  %146 = vrot.lane.b32.xlu0 %v129, 126
  %v147 = vpop.permute.xlu0 %146
  %148 = vrot.lane.b32.xlu0 %v139, 126
  %v149 = vpop.permute.xlu0 %148
  %150 = vrot.lane.b32.xlu0 %v130, 126
  %v151 = vpop.permute.xlu0 %150
  %152 = vrot.lane.b32.xlu0 %v140, 126
  %v153 = vpop.permute.xlu0 %152
  %154 = vrot.lane.b32.xlu0 %v131, 126
  %v155 = vpop.permute.xlu0 %154
  %156 = vrot.lane.b32.xlu0 %v141, 126
  %v157 = vpop.permute.xlu0 %156
  %158 = vrot.lane.b32.xlu0 %v132, 126
  %v159 = vpop.permute.xlu0 %158
  %vm160 = vcmask 1031168
  %v161 = vsel %vm160, %v143, %v145
  %v162 = vsel %vm160, %v145, %v147
  %v163 = vsel %vm160, %v147, %v149
  %v164 = vsel %vm160, %v149, %v151
  %v165 = vsel %vm160, %v151, %v153
  %v166 = vsel %vm160, %v153, %v155
  %v167 = vsel %vm160, %v155, %v157
  %v168 = vsel %vm160, %v157, %v159
  %177 = vst [vmem:[#allocation2 + $0x40] sm:$0xf] %v161
  %178 = vst [vmem:[#allocation2 + $0x48] sm:$0xf] %v162
  %179 = vst [vmem:[#allocation2 + $0x50] sm:$0xf] %v163
  %180 = vst [vmem:[#allocation2 + $0x58] sm:$0xf] %v164
  %181 = vst [vmem:[#allocation2 + $0x60] sm:$0xf] %v165
  %182 = vst [vmem:[#allocation2 + $0x68] sm:$0xf] %v166
  %183 = vst [vmem:[#allocation2 + $0x70] sm:$0xf] %v167
  %184 = vst [vmem:[#allocation2 + $0x78] sm:$0xf] %v168
  %v185 = vld [vmem:[%s0] sm:$0xff]
  %v186 = vld [vmem:[%s0 + $0x8] sm:$0xff]
  %v187 = vld [vmem:[%s0 + $0x10] sm:$0xff]
  %v188 = vld [vmem:[%s0 + $0x18] sm:$0xff]
  %v189 = vld [vmem:[%s0 + $0x20] sm:$0xf]
  %v195 = vcombine.low %v185, %v185
  %v196 = vcombine.low %v186, %v186
  %v197 = vcombine.low %v187, %v187
  %v198 = vcombine.low %v188, %v188
  %v199 = vcombine.low %v189, %v189
  %200 = vrot.lane.b32.xlu0 %v195, 125
  %v201 = vpop.permute.xlu0 %200
  %202 = vrot.lane.b32.xlu0 %v185, 125
  %v203 = vpop.permute.xlu0 %202
  %204 = vrot.lane.b32.xlu0 %v196, 125
  %v205 = vpop.permute.xlu0 %204
  %206 = vrot.lane.b32.xlu0 %v186, 125
  %v207 = vpop.permute.xlu0 %206
  %208 = vrot.lane.b32.xlu0 %v197, 125
  %v209 = vpop.permute.xlu0 %208
  %210 = vrot.lane.b32.xlu0 %v187, 125
  %v211 = vpop.permute.xlu0 %210
  %212 = vrot.lane.b32.xlu0 %v198, 125
  %v213 = vpop.permute.xlu0 %212
  %214 = vrot.lane.b32.xlu0 %v188, 125
  %v215 = vpop.permute.xlu0 %214
  %216 = vrot.lane.b32.xlu0 %v199, 125
  %v217 = vpop.permute.xlu0 %216
  %vm218 = vcmask 1022976
  %v219 = vsel %vm218, %v201, %v203
  %v220 = vsel %vm218, %v203, %v205
  %v221 = vsel %vm218, %v205, %v207
  %v222 = vsel %vm218, %v207, %v209
  %v223 = vsel %vm218, %v209, %v211
  %v224 = vsel %vm218, %v211, %v213
  %v225 = vsel %vm218, %v213, %v215
  %v226 = vsel %vm218, %v215, %v217
  %235 = vst [vmem:[#allocation2 + $0x40] sm:$0xf0] %v219
  %236 = vst [vmem:[#allocation2 + $0x48] sm:$0xf0] %v220
  %237 = vst [vmem:[#allocation2 + $0x50] sm:$0xf0] %v221
  %238 = vst [vmem:[#allocation2 + $0x58] sm:$0xf0] %v222
  %239 = vst [vmem:[#allocation2 + $0x60] sm:$0xf0] %v223
  %240 = vst [vmem:[#allocation2 + $0x68] sm:$0xf0] %v224
  %241 = vst [vmem:[#allocation2 + $0x70] sm:$0xf0] %v225
  %242 = vst [vmem:[#allocation2 + $0x78] sm:$0xf0] %v226
  %v243 = vld [vmem:[%s0] sm:$0xff]
  %v244 = vld [vmem:[%s0 + $0x8] sm:$0xff]
  %v245 = vld [vmem:[%s0 + $0x10] sm:$0xff]
  %v246 = vld [vmem:[%s0 + $0x18] sm:$0xff]
  %v247 = vld [vmem:[%s0 + $0x20] sm:$0xf]
  %v253 = vcombine.high %v243, %v243
  %v254 = vcombine.high %v244, %v244
  %v255 = vcombine.high %v245, %v245
  %v256 = vcombine.high %v246, %v246
  %257 = vrot.lane.b32.xlu0 %v243, 124
  %v258 = vpop.permute.xlu0 %257
  %259 = vrot.lane.b32.xlu0 %v253, 124
  %v260 = vpop.permute.xlu0 %259
  %261 = vrot.lane.b32.xlu0 %v244, 124
  %v262 = vpop.permute.xlu0 %261
  %263 = vrot.lane.b32.xlu0 %v254, 124
  %v264 = vpop.permute.xlu0 %263
  %265 = vrot.lane.b32.xlu0 %v245, 124
  %v266 = vpop.permute.xlu0 %265
  %267 = vrot.lane.b32.xlu0 %v255, 124
  %v268 = vpop.permute.xlu0 %267
  %269 = vrot.lane.b32.xlu0 %v246, 124
  %v270 = vpop.permute.xlu0 %269
  %271 = vrot.lane.b32.xlu0 %v256, 124
  %v272 = vpop.permute.xlu0 %271
  %273 = vrot.lane.b32.xlu0 %v247, 124
  %v274 = vpop.permute.xlu0 %273
  %vm275 = vcmask 1014784
  %v276 = vsel %vm275, %v258, %v260
  %v277 = vsel %vm275, %v260, %v262
  %v278 = vsel %vm275, %v262, %v264
  %v279 = vsel %vm275, %v264, %v266
  %v280 = vsel %vm275, %v266, %v268
  %v281 = vsel %vm275, %v268, %v270
  %v282 = vsel %vm275, %v270, %v272
  %v283 = vsel %vm275, %v272, %v274
  %292 = vst [vmem:[#allocation2 + $0x80] sm:$0xf] %v276
  %293 = vst [vmem:[#allocation2 + $0x88] sm:$0xf] %v277
  %294 = vst [vmem:[#allocation2 + $0x90] sm:$0xf] %v278
  %295 = vst [vmem:[#allocation2 + $0x98] sm:$0xf] %v279
  %296 = vst [vmem:[#allocation2 + $0xa0] sm:$0xf] %v280
  %297 = vst [vmem:[#allocation2 + $0xa8] sm:$0xf] %v281
  %298 = vst [vmem:[#allocation2 + $0xb0] sm:$0xf] %v282
  %299 = vst [vmem:[#allocation2 + $0xb8] sm:$0xf] %v283
  %v300 = vld [vmem:[%s0] sm:$0xff]
  %v301 = vld [vmem:[%s0 + $0x8] sm:$0xff]
  %v302 = vld [vmem:[%s0 + $0x10] sm:$0xff]
  %v303 = vld [vmem:[%s0 + $0x18] sm:$0xff]
  %v304 = vld [vmem:[%s0 + $0x20] sm:$0xf]
  %v310 = vcombine.low %v300, %v300
  %v311 = vcombine.low %v301, %v301
  %v312 = vcombine.low %v302, %v302
  %v313 = vcombine.low %v303, %v303
  %v314 = vcombine.low %v304, %v304
  %315 = vrot.lane.b32.xlu0 %v310, 108
  %v316 = vpop.permute.xlu0 %315
  %317 = vrot.lane.b32.xlu0 %v300, 108
  %v318 = vpop.permute.xlu0 %317
  %319 = vrot.lane.b32.xlu0 %v311, 108
  %v320 = vpop.permute.xlu0 %319
  %321 = vrot.lane.b32.xlu0 %v301, 108
  %v322 = vpop.permute.xlu0 %321
  %323 = vrot.lane.b32.xlu0 %v312, 108
  %v324 = vpop.permute.xlu0 %323
  %325 = vrot.lane.b32.xlu0 %v302, 108
  %v326 = vpop.permute.xlu0 %325
  %327 = vrot.lane.b32.xlu0 %v313, 108
  %v328 = vpop.permute.xlu0 %327
  %329 = vrot.lane.b32.xlu0 %v303, 108
  %v330 = vpop.permute.xlu0 %329
  %331 = vrot.lane.b32.xlu0 %v314, 108
  %v332 = vpop.permute.xlu0 %331
  %vm333 = vcmask 883712
  %v334 = vsel %vm333, %v316, %v318
  %v335 = vsel %vm333, %v318, %v320
  %v336 = vsel %vm333, %v320, %v322
  %v337 = vsel %vm333, %v322, %v324
  %v338 = vsel %vm333, %v324, %v326
  %v339 = vsel %vm333, %v326, %v328
  %v340 = vsel %vm333, %v328, %v330
  %v341 = vsel %vm333, %v330, %v332
  %350 = vst [vmem:[#allocation2 + $0x80] sm:$0xf0] %v334
  %351 = vst [vmem:[#allocation2 + $0x88] sm:$0xf0] %v335
  %352 = vst [vmem:[#allocation2 + $0x90] sm:$0xf0] %v336
  %353 = vst [vmem:[#allocation2 + $0x98] sm:$0xf0] %v337
  %354 = vst [vmem:[#allocation2 + $0xa0] sm:$0xf0] %v338
  %355 = vst [vmem:[#allocation2 + $0xa8] sm:$0xf0] %v339
  %356 = vst [vmem:[#allocation2 + $0xb0] sm:$0xf0] %v340
  %357 = vst [vmem:[#allocation2 + $0xb8] sm:$0xf0] %v341
  %v358 = vld [vmem:[%s0] sm:$0xff]
  %v359 = vld [vmem:[%s0 + $0x8] sm:$0xff]
  %v360 = vld [vmem:[%s0 + $0x10] sm:$0xff]
  %v361 = vld [vmem:[%s0 + $0x18] sm:$0xff]
  %v362 = vld [vmem:[%s0 + $0x20] sm:$0xf]
  %v368 = vcombine.high %v358, %v358
  %v369 = vcombine.high %v359, %v359
  %v370 = vcombine.high %v360, %v360
  %v371 = vcombine.high %v361, %v361
  %372 = vrot.lane.b32.xlu0 %v358, 107
  %v373 = vpop.permute.xlu0 %372
  %374 = vrot.lane.b32.xlu0 %v368, 107
  %v375 = vpop.permute.xlu0 %374
  %376 = vrot.lane.b32.xlu0 %v359, 107
  %v377 = vpop.permute.xlu0 %376
  %378 = vrot.lane.b32.xlu0 %v369, 107
  %v379 = vpop.permute.xlu0 %378
  %380 = vrot.lane.b32.xlu0 %v360, 107
  %v381 = vpop.permute.xlu0 %380
  %382 = vrot.lane.b32.xlu0 %v370, 107
  %v383 = vpop.permute.xlu0 %382
  %384 = vrot.lane.b32.xlu0 %v361, 107
  %v385 = vpop.permute.xlu0 %384
  %386 = vrot.lane.b32.xlu0 %v371, 107
  %v387 = vpop.permute.xlu0 %386
  %388 = vrot.lane.b32.xlu0 %v362, 107
  %v389 = vpop.permute.xlu0 %388
  %vm390 = vcmask 875520
  %v391 = vsel %vm390, %v373, %v375
  %v392 = vsel %vm390, %v375, %v377
  %v393 = vsel %vm390, %v377, %v379
  %v394 = vsel %vm390, %v379, %v381
  %v395 = vsel %vm390, %v381, %v383
  %v396 = vsel %vm390, %v383, %v385
  %v397 = vsel %vm390, %v385, %v387
  %v398 = vsel %vm390, %v387, %v389
  %407 = vst [vmem:[#allocation2 + $0xc0] sm:$0xf] %v391
  %408 = vst [vmem:[#allocation2 + $0xc8] sm:$0xf] %v392
  %409 = vst [vmem:[#allocation2 + $0xd0] sm:$0xf] %v393
  %410 = vst [vmem:[#allocation2 + $0xd8] sm:$0xf] %v394
  %411 = vst [vmem:[#allocation2 + $0xe0] sm:$0xf] %v395
  %412 = vst [vmem:[#allocation2 + $0xe8] sm:$0xf] %v396
  %413 = vst [vmem:[#allocation2 + $0xf0] sm:$0xf] %v397
  %414 = vst [vmem:[#allocation2 + $0xf8] sm:$0xf] %v398
  %v415 = vld [vmem:[%s0] sm:$0xff]
  %v416 = vld [vmem:[%s0 + $0x8] sm:$0xff]
  %v417 = vld [vmem:[%s0 + $0x10] sm:$0xff]
  %v418 = vld [vmem:[%s0 + $0x18] sm:$0xff]
  %v419 = vld [vmem:[%s0 + $0x20] sm:$0xf]
  %v425 = vcombine.low %v415, %v415
  %v426 = vcombine.low %v416, %v416
  %v427 = vcombine.low %v417, %v417
  %v428 = vcombine.low %v418, %v418
  %v429 = vcombine.low %v419, %v419
  %430 = vrot.lane.b32.xlu0 %v425, 106
  %v431 = vpop.permute.xlu0 %430
  %432 = vrot.lane.b32.xlu0 %v415, 106
  %v433 = vpop.permute.xlu0 %432
  %434 = vrot.lane.b32.xlu0 %v426, 106
  %v435 = vpop.permute.xlu0 %434
  %436 = vrot.lane.b32.xlu0 %v416, 106
  %v437 = vpop.permute.xlu0 %436
  %438 = vrot.lane.b32.xlu0 %v427, 106
  %v439 = vpop.permute.xlu0 %438
  %440 = vrot.lane.b32.xlu0 %v417, 106
  %v441 = vpop.permute.xlu0 %440
  %442 = vrot.lane.b32.xlu0 %v428, 106
  %v443 = vpop.permute.xlu0 %442
  %444 = vrot.lane.b32.xlu0 %v418, 106
  %v445 = vpop.permute.xlu0 %444
  %446 = vrot.lane.b32.xlu0 %v429, 106
  %v447 = vpop.permute.xlu0 %446
  %vm448 = vcmask 867328
  %v449 = vsel %vm448, %v431, %v433
  %v450 = vsel %vm448, %v433, %v435
  %v451 = vsel %vm448, %v435, %v437
  %v452 = vsel %vm448, %v437, %v439
  %v453 = vsel %vm448, %v439, %v441
  %v454 = vsel %vm448, %v441, %v443
  %v455 = vsel %vm448, %v443, %v445
  %v456 = vsel %vm448, %v445, %v447
  %465 = vst [vmem:[#allocation2 + $0xc0] sm:$0xf0] %v449
  %466 = vst [vmem:[#allocation2 + $0xc8] sm:$0xf0] %v450
  %467 = vst [vmem:[#allocation2 + $0xd0] sm:$0xf0] %v451
  %468 = vst [vmem:[#allocation2 + $0xd8] sm:$0xf0] %v452
  %469 = vst [vmem:[#allocation2 + $0xe0] sm:$0xf0] %v453
  %470 = vst [vmem:[#allocation2 + $0xe8] sm:$0xf0] %v454
  %471 = vst [vmem:[#allocation2 + $0xf0] sm:$0xf0] %v455
  %472 = vst [vmem:[#allocation2 + $0xf8] sm:$0xf0] %v456
  %v473 = vld [vmem:[%s0] sm:$0xff]
  %v474 = vld [vmem:[%s0 + $0x8] sm:$0xff]
  %v475 = vld [vmem:[%s0 + $0x10] sm:$0xff]
  %v476 = vld [vmem:[%s0 + $0x18] sm:$0xff]
  %v477 = vld [vmem:[%s0 + $0x20] sm:$0xf]
  %v483 = vcombine.high %v473, %v473
  %v484 = vcombine.high %v474, %v474
  %v485 = vcombine.high %v475, %v475
  %v486 = vcombine.high %v476, %v476
  %487 = vrot.lane.b32.xlu0 %v473, 105
  %v488 = vpop.permute.xlu0 %487
  %489 = vrot.lane.b32.xlu0 %v483, 105
  %v490 = vpop.permute.xlu0 %489
  %491 = vrot.lane.b32.xlu0 %v474, 105
  %v492 = vpop.permute.xlu0 %491
  %493 = vrot.lane.b32.xlu0 %v484, 105
  %v494 = vpop.permute.xlu0 %493
  %495 = vrot.lane.b32.xlu0 %v475, 105
  %v496 = vpop.permute.xlu0 %495
  %497 = vrot.lane.b32.xlu0 %v485, 105
  %v498 = vpop.permute.xlu0 %497
  %499 = vrot.lane.b32.xlu0 %v476, 105
  %v500 = vpop.permute.xlu0 %499
  %501 = vrot.lane.b32.xlu0 %v486, 105
  %v502 = vpop.permute.xlu0 %501
  %503 = vrot.lane.b32.xlu0 %v477, 105
  %v504 = vpop.permute.xlu0 %503
  %vm505 = vcmask 859136
  %v506 = vsel %vm505, %v488, %v490
  %v507 = vsel %vm505, %v490, %v492
  %v508 = vsel %vm505, %v492, %v494
  %v509 = vsel %vm505, %v494, %v496
  %v510 = vsel %vm505, %v496, %v498
  %v511 = vsel %vm505, %v498, %v500
  %v512 = vsel %vm505, %v500, %v502
  %v513 = vsel %vm505, %v502, %v504
  %522 = vst [vmem:[#allocation2 + $0x100] sm:$0xf] %v506
  %523 = vst [vmem:[#allocation2 + $0x108] sm:$0xf] %v507
  %524 = vst [vmem:[#allocation2 + $0x110] sm:$0xf] %v508
  %525 = vst [vmem:[#allocation2 + $0x118] sm:$0xf] %v509
  %526 = vst [vmem:[#allocation2 + $0x120] sm:$0xf] %v510
  %527 = vst [vmem:[#allocation2 + $0x128] sm:$0xf] %v511
  %528 = vst [vmem:[#allocation2 + $0x130] sm:$0xf] %v512
  %529 = vst [vmem:[#allocation2 + $0x138] sm:$0xf] %v513
  %v530 = vld [vmem:[%s0] sm:$0xff]
  %v531 = vld [vmem:[%s0 + $0x8] sm:$0xff]
  %v532 = vld [vmem:[%s0 + $0x10] sm:$0xff]
  %v533 = vld [vmem:[%s0 + $0x18] sm:$0xff]
  %v534 = vld [vmem:[%s0 + $0x20] sm:$0xf]
  %v540 = vcombine.low %v530, %v530
  %v541 = vcombine.low %v531, %v531
  %v542 = vcombine.low %v532, %v532
  %v543 = vcombine.low %v533, %v533
  %v544 = vcombine.low %v534, %v534
  %545 = vrot.lane.b32.xlu0 %v540, 104
  %v546 = vpop.permute.xlu0 %545
  %547 = vrot.lane.b32.xlu0 %v530, 104
  %v548 = vpop.permute.xlu0 %547
  %549 = vrot.lane.b32.xlu0 %v541, 104
  %v550 = vpop.permute.xlu0 %549
  %551 = vrot.lane.b32.xlu0 %v531, 104
  %v552 = vpop.permute.xlu0 %551
  %553 = vrot.lane.b32.xlu0 %v542, 104
  %v554 = vpop.permute.xlu0 %553
  %555 = vrot.lane.b32.xlu0 %v532, 104
  %v556 = vpop.permute.xlu0 %555
  %557 = vrot.lane.b32.xlu0 %v543, 104
  %v558 = vpop.permute.xlu0 %557
  %559 = vrot.lane.b32.xlu0 %v533, 104
  %v560 = vpop.permute.xlu0 %559
  %561 = vrot.lane.b32.xlu0 %v544, 104
  %v562 = vpop.permute.xlu0 %561
  %vm563 = vcmask 850944
  %v564 = vsel %vm563, %v546, %v548
  %v565 = vsel %vm563, %v548, %v550
  %v566 = vsel %vm563, %v550, %v552
  %v567 = vsel %vm563, %v552, %v554
  %v568 = vsel %vm563, %v554, %v556
  %v569 = vsel %vm563, %v556, %v558
  %v570 = vsel %vm563, %v558, %v560
  %v571 = vsel %vm563, %v560, %v562
  %580 = vst [vmem:[#allocation2 + $0x100] sm:$0xf0] %v564
  %581 = vst [vmem:[#allocation2 + $0x108] sm:$0xf0] %v565
  %582 = vst [vmem:[#allocation2 + $0x110] sm:$0xf0] %v566
  %583 = vst [vmem:[#allocation2 + $0x118] sm:$0xf0] %v567
  %584 = vst [vmem:[#allocation2 + $0x120] sm:$0xf0] %v568
  %585 = vst [vmem:[#allocation2 + $0x128] sm:$0xf0] %v569
  %586 = vst [vmem:[#allocation2 + $0x130] sm:$0xf0] %v570
  %587 = vst [vmem:[#allocation2 + $0x138] sm:$0xf0] %v571
  %v588 = vld [vmem:[%s0] sm:$0xff]
  %v589 = vld [vmem:[%s0 + $0x8] sm:$0xff]
  %v590 = vld [vmem:[%s0 + $0x10] sm:$0xff]
  %v591 = vld [vmem:[%s0 + $0x18] sm:$0xff]
  %v592 = vld [vmem:[%s0 + $0x20] sm:$0xf]
  %v598 = vcombine.high %v588, %v588
  %v599 = vcombine.high %v589, %v589
  %v600 = vcombine.high %v590, %v590
  %v601 = vcombine.high %v591, %v591
  %602 = vrot.lane.b32.xlu0 %v588, 88
  %v603 = vpop.permute.xlu0 %602
  %604 = vrot.lane.b32.xlu0 %v598, 88
  %v605 = vpop.permute.xlu0 %604
  %606 = vrot.lane.b32.xlu0 %v589, 88
  %v607 = vpop.permute.xlu0 %606
  %608 = vrot.lane.b32.xlu0 %v599, 88
  %v609 = vpop.permute.xlu0 %608
  %610 = vrot.lane.b32.xlu0 %v590, 88
  %v611 = vpop.permute.xlu0 %610
  %612 = vrot.lane.b32.xlu0 %v600, 88
  %v613 = vpop.permute.xlu0 %612
  %614 = vrot.lane.b32.xlu0 %v591, 88
  %v615 = vpop.permute.xlu0 %614
  %616 = vrot.lane.b32.xlu0 %v601, 88
  %v617 = vpop.permute.xlu0 %616
  %618 = vrot.lane.b32.xlu0 %v592, 88
  %v619 = vpop.permute.xlu0 %618
  %vm620 = vcmask 719872
  %v621 = vsel %vm620, %v603, %v605
  %v622 = vsel %vm620, %v605, %v607
  %v623 = vsel %vm620, %v607, %v609
  %v624 = vsel %vm620, %v609, %v611
  %v625 = vsel %vm620, %v611, %v613
  %v626 = vsel %vm620, %v613, %v615
  %v627 = vsel %vm620, %v615, %v617
  %v628 = vsel %vm620, %v617, %v619
  %637 = vst [vmem:[#allocation2 + $0x140] sm:$0xf] %v621
  %638 = vst [vmem:[#allocation2 + $0x148] sm:$0xf] %v622
  %639 = vst [vmem:[#allocation2 + $0x150] sm:$0xf] %v623
  %640 = vst [vmem:[#allocation2 + $0x158] sm:$0xf] %v624
  %641 = vst [vmem:[#allocation2 + $0x160] sm:$0xf] %v625
  %642 = vst [vmem:[#allocation2 + $0x168] sm:$0xf] %v626
  %643 = vst [vmem:[#allocation2 + $0x170] sm:$0xf] %v627
  %644 = vst [vmem:[#allocation2 + $0x178] sm:$0xf] %v628
  %v645 = vld [vmem:[%s0] sm:$0xff]
  %v646 = vld [vmem:[%s0 + $0x8] sm:$0xff]
  %v647 = vld [vmem:[%s0 + $0x10] sm:$0xff]
  %v648 = vld [vmem:[%s0 + $0x18] sm:$0xff]
  %v649 = vld [vmem:[%s0 + $0x20] sm:$0xf]
  %v655 = vcombine.low %v645, %v645
  %v656 = vcombine.low %v646, %v646
  %v657 = vcombine.low %v647, %v647
  %v658 = vcombine.low %v648, %v648
  %v659 = vcombine.low %v649, %v649
  %660 = vrot.lane.b32.xlu0 %v655, 87
  %v661 = vpop.permute.xlu0 %660
  %662 = vrot.lane.b32.xlu0 %v645, 87
  %v663 = vpop.permute.xlu0 %662
  %664 = vrot.lane.b32.xlu0 %v656, 87
  %v665 = vpop.permute.xlu0 %664
  %666 = vrot.lane.b32.xlu0 %v646, 87
  %v667 = vpop.permute.xlu0 %666
  %668 = vrot.lane.b32.xlu0 %v657, 87
  %v669 = vpop.permute.xlu0 %668
  %670 = vrot.lane.b32.xlu0 %v647, 87
  %v671 = vpop.permute.xlu0 %670
  %672 = vrot.lane.b32.xlu0 %v658, 87
  %v673 = vpop.permute.xlu0 %672
  %674 = vrot.lane.b32.xlu0 %v648, 87
  %v675 = vpop.permute.xlu0 %674
  %676 = vrot.lane.b32.xlu0 %v659, 87
  %v677 = vpop.permute.xlu0 %676
  %vm678 = vcmask 711680
  %v679 = vsel %vm678, %v661, %v663
  %v680 = vsel %vm678, %v663, %v665
  %v681 = vsel %vm678, %v665, %v667
  %v682 = vsel %vm678, %v667, %v669
  %v683 = vsel %vm678, %v669, %v671
  %v684 = vsel %vm678, %v671, %v673
  %v685 = vsel %vm678, %v673, %v675
  %v686 = vsel %vm678, %v675, %v677
  %695 = vst [vmem:[#allocation2 + $0x140] sm:$0xf0] %v679
  %696 = vst [vmem:[#allocation2 + $0x148] sm:$0xf0] %v680
  %697 = vst [vmem:[#allocation2 + $0x150] sm:$0xf0] %v681
  %698 = vst [vmem:[#allocation2 + $0x158] sm:$0xf0] %v682
  %699 = vst [vmem:[#allocation2 + $0x160] sm:$0xf0] %v683
  %700 = vst [vmem:[#allocation2 + $0x168] sm:$0xf0] %v684
  %701 = vst [vmem:[#allocation2 + $0x170] sm:$0xf0] %v685
  %702 = vst [vmem:[#allocation2 + $0x178] sm:$0xf0] %v686
  %v703 = vld [vmem:[%s0] sm:$0xff]
  %v704 = vld [vmem:[%s0 + $0x8] sm:$0xff]
  %v705 = vld [vmem:[%s0 + $0x10] sm:$0xff]
  %v706 = vld [vmem:[%s0 + $0x18] sm:$0xff]
  %v707 = vld [vmem:[%s0 + $0x20] sm:$0xf]
  %v713 = vcombine.high %v703, %v703
  %v714 = vcombine.high %v704, %v704
  %v715 = vcombine.high %v705, %v705
  %v716 = vcombine.high %v706, %v706
  %717 = vrot.lane.b32.xlu0 %v703, 86
  %v718 = vpop.permute.xlu0 %717
  %719 = vrot.lane.b32.xlu0 %v713, 86
  %v720 = vpop.permute.xlu0 %719
  %721 = vrot.lane.b32.xlu0 %v704, 86
  %v722 = vpop.permute.xlu0 %721
  %723 = vrot.lane.b32.xlu0 %v714, 86
  %v724 = vpop.permute.xlu0 %723
  %725 = vrot.lane.b32.xlu0 %v705, 86
  %v726 = vpop.permute.xlu0 %725
  %727 = vrot.lane.b32.xlu0 %v715, 86
  %v728 = vpop.permute.xlu0 %727
  %729 = vrot.lane.b32.xlu0 %v706, 86
  %v730 = vpop.permute.xlu0 %729
  %731 = vrot.lane.b32.xlu0 %v716, 86
  %v732 = vpop.permute.xlu0 %731
  %733 = vrot.lane.b32.xlu0 %v707, 86
  %v734 = vpop.permute.xlu0 %733
  %vm735 = vcmask 703488
  %v736 = vsel %vm735, %v718, %v720
  %v737 = vsel %vm735, %v720, %v722
  %v738 = vsel %vm735, %v722, %v724
  %v739 = vsel %vm735, %v724, %v726
  %v740 = vsel %vm735, %v726, %v728
  %v741 = vsel %vm735, %v728, %v730
  %v742 = vsel %vm735, %v730, %v732
  %v743 = vsel %vm735, %v732, %v734
  %752 = vst [vmem:[#allocation2 + $0x180] sm:$0xf] %v736
  %753 = vst [vmem:[#allocation2 + $0x188] sm:$0xf] %v737
  %754 = vst [vmem:[#allocation2 + $0x190] sm:$0xf] %v738
  %755 = vst [vmem:[#allocation2 + $0x198] sm:$0xf] %v739
  %756 = vst [vmem:[#allocation2 + $0x1a0] sm:$0xf] %v740
  %757 = vst [vmem:[#allocation2 + $0x1a8] sm:$0xf] %v741
  %758 = vst [vmem:[#allocation2 + $0x1b0] sm:$0xf] %v742
  %759 = vst [vmem:[#allocation2 + $0x1b8] sm:$0xf] %v743
  %v760 = vld [vmem:[%s0] sm:$0xff]
  %v761 = vld [vmem:[%s0 + $0x8] sm:$0xff]
  %v762 = vld [vmem:[%s0 + $0x10] sm:$0xff]
  %v763 = vld [vmem:[%s0 + $0x18] sm:$0xff]
  %v764 = vld [vmem:[%s0 + $0x20] sm:$0xf]
  %v770 = vcombine.low %v760, %v760
  %v771 = vcombine.low %v761, %v761
  %v772 = vcombine.low %v762, %v762
  %v773 = vcombine.low %v763, %v763
  %v774 = vcombine.low %v764, %v764
  %775 = vrot.lane.b32.xlu0 %v770, 85
  %v776 = vpop.permute.xlu0 %775
  %777 = vrot.lane.b32.xlu0 %v760, 85
  %v778 = vpop.permute.xlu0 %777
  %779 = vrot.lane.b32.xlu0 %v771, 85
  %v780 = vpop.permute.xlu0 %779
  %781 = vrot.lane.b32.xlu0 %v761, 85
  %v782 = vpop.permute.xlu0 %781
  %783 = vrot.lane.b32.xlu0 %v772, 85
  %v784 = vpop.permute.xlu0 %783
  %785 = vrot.lane.b32.xlu0 %v762, 85
  %v786 = vpop.permute.xlu0 %785
  %787 = vrot.lane.b32.xlu0 %v773, 85
  %v788 = vpop.permute.xlu0 %787
  %789 = vrot.lane.b32.xlu0 %v763, 85
  %v790 = vpop.permute.xlu0 %789
  %791 = vrot.lane.b32.xlu0 %v774, 85
  %v792 = vpop.permute.xlu0 %791
  %vm793 = vcmask 695296
  %v794 = vsel %vm793, %v776, %v778
  %v795 = vsel %vm793, %v778, %v780
  %v796 = vsel %vm793, %v780, %v782
  %v797 = vsel %vm793, %v782, %v784
  %v798 = vsel %vm793, %v784, %v786
  %v799 = vsel %vm793, %v786, %v788
  %v800 = vsel %vm793, %v788, %v790
  %v801 = vsel %vm793, %v790, %v792
  %810 = vst [vmem:[#allocation2 + $0x180] sm:$0xf0] %v794
  %811 = vst [vmem:[#allocation2 + $0x188] sm:$0xf0] %v795
  %812 = vst [vmem:[#allocation2 + $0x190] sm:$0xf0] %v796
  %813 = vst [vmem:[#allocation2 + $0x198] sm:$0xf0] %v797
  %814 = vst [vmem:[#allocation2 + $0x1a0] sm:$0xf0] %v798
  %815 = vst [vmem:[#allocation2 + $0x1a8] sm:$0xf0] %v799
  %816 = vst [vmem:[#allocation2 + $0x1b0] sm:$0xf0] %v800
  %817 = vst [vmem:[#allocation2 + $0x1b8] sm:$0xf0] %v801
  %v818 = vld [vmem:[%s0] sm:$0xff]
  %v819 = vld [vmem:[%s0 + $0x8] sm:$0xff]
  %v820 = vld [vmem:[%s0 + $0x10] sm:$0xff]
  %v821 = vld [vmem:[%s0 + $0x18] sm:$0xff]
  %v822 = vld [vmem:[%s0 + $0x20] sm:$0xf]
  %v828 = vcombine.high %v818, %v818
  %v829 = vcombine.high %v819, %v819
  %v830 = vcombine.high %v820, %v820
  %v831 = vcombine.high %v821, %v821
  %832 = vrot.lane.b32.xlu0 %v818, 84
  %v833 = vpop.permute.xlu0 %832
  %834 = vrot.lane.b32.xlu0 %v828, 84
  %v835 = vpop.permute.xlu0 %834
  %836 = vrot.lane.b32.xlu0 %v819, 84
  %v837 = vpop.permute.xlu0 %836
  %838 = vrot.lane.b32.xlu0 %v829, 84
  %v839 = vpop.permute.xlu0 %838
  %840 = vrot.lane.b32.xlu0 %v820, 84
  %v841 = vpop.permute.xlu0 %840
  %842 = vrot.lane.b32.xlu0 %v830, 84
  %v843 = vpop.permute.xlu0 %842
  %844 = vrot.lane.b32.xlu0 %v821, 84
  %v845 = vpop.permute.xlu0 %844
  %846 = vrot.lane.b32.xlu0 %v831, 84
  %v847 = vpop.permute.xlu0 %846
  %848 = vrot.lane.b32.xlu0 %v822, 84
  %v849 = vpop.permute.xlu0 %848
  %vm850 = vcmask 687104
  %v851 = vsel %vm850, %v833, %v835
  %v852 = vsel %vm850, %v835, %v837
  %v853 = vsel %vm850, %v837, %v839
  %v854 = vsel %vm850, %v839, %v841
  %v855 = vsel %vm850, %v841, %v843
  %v856 = vsel %vm850, %v843, %v845
  %v857 = vsel %vm850, %v845, %v847
  %v858 = vsel %vm850, %v847, %v849
  %867 = vst [vmem:[#allocation2 + $0x1c0] sm:$0xf] %v851
  %868 = vst [vmem:[#allocation2 + $0x1c8] sm:$0xf] %v852
  %869 = vst [vmem:[#allocation2 + $0x1d0] sm:$0xf] %v853
  %870 = vst [vmem:[#allocation2 + $0x1d8] sm:$0xf] %v854
  %871 = vst [vmem:[#allocation2 + $0x1e0] sm:$0xf] %v855
  %872 = vst [vmem:[#allocation2 + $0x1e8] sm:$0xf] %v856
  %873 = vst [vmem:[#allocation2 + $0x1f0] sm:$0xf] %v857
  %874 = vst [vmem:[#allocation2 + $0x1f8] sm:$0xf] %v858
  %v875 = vld [vmem:[%s0] sm:$0xff]
  %v876 = vld [vmem:[%s0 + $0x8] sm:$0xff]
  %v877 = vld [vmem:[%s0 + $0x10] sm:$0xff]
  %v878 = vld [vmem:[%s0 + $0x18] sm:$0xff]
  %v879 = vld [vmem:[%s0 + $0x20] sm:$0xf]
  %v885 = vcombine.low %v875, %v875
  %v886 = vcombine.low %v876, %v876
  %v887 = vcombine.low %v877, %v877
  %v888 = vcombine.low %v878, %v878
  %v889 = vcombine.low %v879, %v879
  %890 = vrot.lane.b32.xlu0 %v885, 68
  %v891 = vpop.permute.xlu0 %890
  %892 = vrot.lane.b32.xlu0 %v875, 68
  %v893 = vpop.permute.xlu0 %892
  %894 = vrot.lane.b32.xlu0 %v886, 68
  %v895 = vpop.permute.xlu0 %894
  %896 = vrot.lane.b32.xlu0 %v876, 68
  %v897 = vpop.permute.xlu0 %896
  %898 = vrot.lane.b32.xlu0 %v887, 68
  %v899 = vpop.permute.xlu0 %898
  %900 = vrot.lane.b32.xlu0 %v877, 68
  %v901 = vpop.permute.xlu0 %900
  %902 = vrot.lane.b32.xlu0 %v888, 68
  %v903 = vpop.permute.xlu0 %902
  %904 = vrot.lane.b32.xlu0 %v878, 68
  %v905 = vpop.permute.xlu0 %904
  %906 = vrot.lane.b32.xlu0 %v889, 68
  %v907 = vpop.permute.xlu0 %906
  %vm908 = vcmask 556032
  %v909 = vsel %vm908, %v891, %v893
  %v910 = vsel %vm908, %v893, %v895
  %v911 = vsel %vm908, %v895, %v897
  %v912 = vsel %vm908, %v897, %v899
  %v913 = vsel %vm908, %v899, %v901
  %v914 = vsel %vm908, %v901, %v903
  %v915 = vsel %vm908, %v903, %v905
  %v916 = vsel %vm908, %v905, %v907
  %925 = vst [vmem:[#allocation2 + $0x1c0] sm:$0xf0] %v909
  %926 = vst [vmem:[#allocation2 + $0x1c8] sm:$0xf0] %v910
  %927 = vst [vmem:[#allocation2 + $0x1d0] sm:$0xf0] %v911
  %928 = vst [vmem:[#allocation2 + $0x1d8] sm:$0xf0] %v912
  %929 = vst [vmem:[#allocation2 + $0x1e0] sm:$0xf0] %v913
  %930 = vst [vmem:[#allocation2 + $0x1e8] sm:$0xf0] %v914
  %931 = vst [vmem:[#allocation2 + $0x1f0] sm:$0xf0] %v915
  %932 = vst [vmem:[#allocation2 + $0x1f8] sm:$0xf0] %v916
  %v933 = vld [vmem:[%s0] sm:$0xff]
  %v934 = vld [vmem:[%s0 + $0x8] sm:$0xff]
  %v935 = vld [vmem:[%s0 + $0x10] sm:$0xff]
  %v936 = vld [vmem:[%s0 + $0x18] sm:$0xff]
  %v937 = vld [vmem:[%s0 + $0x20] sm:$0xf]
  %v943 = vcombine.high %v933, %v933
  %v944 = vcombine.high %v934, %v934
  %v945 = vcombine.high %v935, %v935
  %v946 = vcombine.high %v936, %v936
  %947 = vrot.lane.b32.xlu0 %v933, 67
  %v948 = vpop.permute.xlu0 %947
  %949 = vrot.lane.b32.xlu0 %v943, 67
  %v950 = vpop.permute.xlu0 %949
  %951 = vrot.lane.b32.xlu0 %v934, 67
  %v952 = vpop.permute.xlu0 %951
  %953 = vrot.lane.b32.xlu0 %v944, 67
  %v954 = vpop.permute.xlu0 %953
  %955 = vrot.lane.b32.xlu0 %v935, 67
  %v956 = vpop.permute.xlu0 %955
  %957 = vrot.lane.b32.xlu0 %v945, 67
  %v958 = vpop.permute.xlu0 %957
  %959 = vrot.lane.b32.xlu0 %v936, 67
  %v960 = vpop.permute.xlu0 %959
  %961 = vrot.lane.b32.xlu0 %v946, 67
  %v962 = vpop.permute.xlu0 %961
  %963 = vrot.lane.b32.xlu0 %v937, 67
  %v964 = vpop.permute.xlu0 %963
  %vm965 = vcmask 547840
  %v966 = vsel %vm965, %v948, %v950
  %v967 = vsel %vm965, %v950, %v952
  %v968 = vsel %vm965, %v952, %v954
  %v969 = vsel %vm965, %v954, %v956
  %v970 = vsel %vm965, %v956, %v958
  %v971 = vsel %vm965, %v958, %v960
  %v972 = vsel %vm965, %v960, %v962
  %v973 = vsel %vm965, %v962, %v964
  %982 = vst [vmem:[#allocation2 + $0x200] sm:$0xf] %v966
  %983 = vst [vmem:[#allocation2 + $0x208] sm:$0xf] %v967
  %984 = vst [vmem:[#allocation2 + $0x210] sm:$0xf] %v968
  %985 = vst [vmem:[#allocation2 + $0x218] sm:$0xf] %v969
  %986 = vst [vmem:[#allocation2 + $0x220] sm:$0xf] %v970
  %987 = vst [vmem:[#allocation2 + $0x228] sm:$0xf] %v971
  %988 = vst [vmem:[#allocation2 + $0x230] sm:$0xf] %v972
  %989 = vst [vmem:[#allocation2 + $0x238] sm:$0xf] %v973
  %v990 = vld [vmem:[%s0] sm:$0xff]
  %v991 = vld [vmem:[%s0 + $0x8] sm:$0xff]
  %v992 = vld [vmem:[%s0 + $0x10] sm:$0xff]
  %v993 = vld [vmem:[%s0 + $0x18] sm:$0xff]
  %v994 = vld [vmem:[%s0 + $0x20] sm:$0xf]
  %v1000 = vcombine.low %v990, %v990
  %v1001 = vcombine.low %v991, %v991
  %v1002 = vcombine.low %v992, %v992
  %v1003 = vcombine.low %v993, %v993
  %v1004 = vcombine.low %v994, %v994
  %1005 = vrot.lane.b32.xlu0 %v1000, 66
  %v1006 = vpop.permute.xlu0 %1005
  %1007 = vrot.lane.b32.xlu0 %v990, 66
  %v1008 = vpop.permute.xlu0 %1007
  %1009 = vrot.lane.b32.xlu0 %v1001, 66
  %v1010 = vpop.permute.xlu0 %1009
  %1011 = vrot.lane.b32.xlu0 %v991, 66
  %v1012 = vpop.permute.xlu0 %1011
  %1013 = vrot.lane.b32.xlu0 %v1002, 66
  %v1014 = vpop.permute.xlu0 %1013
  %1015 = vrot.lane.b32.xlu0 %v992, 66
  %v1016 = vpop.permute.xlu0 %1015
  %1017 = vrot.lane.b32.xlu0 %v1003, 66
  %v1018 = vpop.permute.xlu0 %1017
  %1019 = vrot.lane.b32.xlu0 %v993, 66
  %v1020 = vpop.permute.xlu0 %1019
  %1021 = vrot.lane.b32.xlu0 %v1004, 66
  %v1022 = vpop.permute.xlu0 %1021
  %vm1023 = vcmask 539648
  %v1024 = vsel %vm1023, %v1006, %v1008
  %v1025 = vsel %vm1023, %v1008, %v1010
  %v1026 = vsel %vm1023, %v1010, %v1012
  %v1027 = vsel %vm1023, %v1012, %v1014
  %v1028 = vsel %vm1023, %v1014, %v1016
  %v1029 = vsel %vm1023, %v1016, %v1018
  %v1030 = vsel %vm1023, %v1018, %v1020
  %v1031 = vsel %vm1023, %v1020, %v1022
  %1040 = vst [vmem:[#allocation2 + $0x200] sm:$0xf0] %v1024
  %1041 = vst [vmem:[#allocation2 + $0x208] sm:$0xf0] %v1025
  %1042 = vst [vmem:[#allocation2 + $0x210] sm:$0xf0] %v1026
  %1043 = vst [vmem:[#allocation2 + $0x218] sm:$0xf0] %v1027
  %1044 = vst [vmem:[#allocation2 + $0x220] sm:$0xf0] %v1028
  %1045 = vst [vmem:[#allocation2 + $0x228] sm:$0xf0] %v1029
  %1046 = vst [vmem:[#allocation2 + $0x230] sm:$0xf0] %v1030
  %1047 = vst [vmem:[#allocation2 + $0x238] sm:$0xf0] %v1031
  %v1048 = vld [vmem:[%s0] sm:$0xff]
  %v1049 = vld [vmem:[%s0 + $0x8] sm:$0xff]
  %v1050 = vld [vmem:[%s0 + $0x10] sm:$0xff]
  %v1051 = vld [vmem:[%s0 + $0x18] sm:$0xff]
  %v1052 = vld [vmem:[%s0 + $0x20] sm:$0xf]
  %v1058 = vcombine.high %v1048, %v1048
  %v1059 = vcombine.high %v1049, %v1049
  %v1060 = vcombine.high %v1050, %v1050
  %v1061 = vcombine.high %v1051, %v1051
  %1062 = vrot.lane.b32.xlu0 %v1048, 65
  %v1063 = vpop.permute.xlu0 %1062
  %1064 = vrot.lane.b32.xlu0 %v1058, 65
  %v1065 = vpop.permute.xlu0 %1064
  %1066 = vrot.lane.b32.xlu0 %v1049, 65
  %v1067 = vpop.permute.xlu0 %1066
  %1068 = vrot.lane.b32.xlu0 %v1059, 65
  %v1069 = vpop.permute.xlu0 %1068
  %1070 = vrot.lane.b32.xlu0 %v1050, 65
  %v1071 = vpop.permute.xlu0 %1070
  %1072 = vrot.lane.b32.xlu0 %v1060, 65
  %v1073 = vpop.permute.xlu0 %1072
  %1074 = vrot.lane.b32.xlu0 %v1051, 65
  %v1075 = vpop.permute.xlu0 %1074
  %1076 = vrot.lane.b32.xlu0 %v1061, 65
  %v1077 = vpop.permute.xlu0 %1076
  %1078 = vrot.lane.b32.xlu0 %v1052, 65
  %v1079 = vpop.permute.xlu0 %1078
  %vm1080 = vcmask 531456
  %v1081 = vsel %vm1080, %v1063, %v1065
  %v1082 = vsel %vm1080, %v1065, %v1067
  %v1083 = vsel %vm1080, %v1067, %v1069
  %v1084 = vsel %vm1080, %v1069, %v1071
  %v1085 = vsel %vm1080, %v1071, %v1073
  %v1086 = vsel %vm1080, %v1073, %v1075
  %v1087 = vsel %vm1080, %v1075, %v1077
  %v1088 = vsel %vm1080, %v1077, %v1079
  %1097 = vst [vmem:[#allocation2 + $0x240] sm:$0xf] %v1081
  %1098 = vst [vmem:[#allocation2 + $0x248] sm:$0xf] %v1082
  %1099 = vst [vmem:[#allocation2 + $0x250] sm:$0xf] %v1083
  %1100 = vst [vmem:[#allocation2 + $0x258] sm:$0xf] %v1084
  %1101 = vst [vmem:[#allocation2 + $0x260] sm:$0xf] %v1085
  %1102 = vst [vmem:[#allocation2 + $0x268] sm:$0xf] %v1086
  %1103 = vst [vmem:[#allocation2 + $0x270] sm:$0xf] %v1087
  %1104 = vst [vmem:[#allocation2 + $0x278] sm:$0xf] %v1088
  %v1105 = vld [vmem:[%s0] sm:$0xff]
  %v1106 = vld [vmem:[%s0 + $0x8] sm:$0xff]
  %v1107 = vld [vmem:[%s0 + $0x10] sm:$0xff]
  %v1108 = vld [vmem:[%s0 + $0x18] sm:$0xff]
  %v1109 = vld [vmem:[%s0 + $0x20] sm:$0xf]
  %v1115 = vcombine.low %v1105, %v1105
  %v1116 = vcombine.low %v1106, %v1106
  %v1117 = vcombine.low %v1107, %v1107
  %v1118 = vcombine.low %v1108, %v1108
  %v1119 = vcombine.low %v1109, %v1109
  %1120 = vrot.lane.b32.xlu0 %v1115, 64
  %v1121 = vpop.permute.xlu0 %1120
  %1122 = vrot.lane.b32.xlu0 %v1105, 64
  %v1123 = vpop.permute.xlu0 %1122
  %1124 = vrot.lane.b32.xlu0 %v1116, 64
  %v1125 = vpop.permute.xlu0 %1124
  %1126 = vrot.lane.b32.xlu0 %v1106, 64
  %v1127 = vpop.permute.xlu0 %1126
  %1128 = vrot.lane.b32.xlu0 %v1117, 64
  %v1129 = vpop.permute.xlu0 %1128
  %1130 = vrot.lane.b32.xlu0 %v1107, 64
  %v1131 = vpop.permute.xlu0 %1130
  %1132 = vrot.lane.b32.xlu0 %v1118, 64
  %v1133 = vpop.permute.xlu0 %1132
  %1134 = vrot.lane.b32.xlu0 %v1108, 64
  %v1135 = vpop.permute.xlu0 %1134
  %1136 = vrot.lane.b32.xlu0 %v1119, 64
  %v1137 = vpop.permute.xlu0 %1136
  %vm1138 = vcmask 523264
  %v1139 = vsel %vm1138, %v1121, %v1123
  %v1140 = vsel %vm1138, %v1123, %v1125
  %v1141 = vsel %vm1138, %v1125, %v1127
  %v1142 = vsel %vm1138, %v1127, %v1129
  %v1143 = vsel %vm1138, %v1129, %v1131
  %v1144 = vsel %vm1138, %v1131, %v1133
  %v1145 = vsel %vm1138, %v1133, %v1135
  %v1146 = vsel %vm1138, %v1135, %v1137
  %1155 = vst [vmem:[#allocation2 + $0x240] sm:$0xf0] %v1139
  %1156 = vst [vmem:[#allocation2 + $0x248] sm:$0xf0] %v1140
  %1157 = vst [vmem:[#allocation2 + $0x250] sm:$0xf0] %v1141
  %1158 = vst [vmem:[#allocation2 + $0x258] sm:$0xf0] %v1142
  %1159 = vst [vmem:[#allocation2 + $0x260] sm:$0xf0] %v1143
  %1160 = vst [vmem:[#allocation2 + $0x268] sm:$0xf0] %v1144
  %1161 = vst [vmem:[#allocation2 + $0x270] sm:$0xf0] %v1145
  %1162 = vst [vmem:[#allocation2 + $0x278] sm:$0xf0] %v1146
  %v1163 = vld [vmem:[%s0] sm:$0xff]
  %v1164 = vld [vmem:[%s0 + $0x8] sm:$0xff]
  %v1165 = vld [vmem:[%s0 + $0x10] sm:$0xff]
  %v1166 = vld [vmem:[%s0 + $0x18] sm:$0xff]
  %v1167 = vld [vmem:[%s0 + $0x20] sm:$0xf]
  %v1173 = vcombine.high %v1163, %v1163
  %v1174 = vcombine.high %v1164, %v1164
  %v1175 = vcombine.high %v1165, %v1165
  %v1176 = vcombine.high %v1166, %v1166
  %1177 = vrot.lane.b32.xlu0 %v1163, 48
  %v1178 = vpop.permute.xlu0 %1177
  %1179 = vrot.lane.b32.xlu0 %v1173, 48
  %v1180 = vpop.permute.xlu0 %1179
  %1181 = vrot.lane.b32.xlu0 %v1164, 48
  %v1182 = vpop.permute.xlu0 %1181
  %1183 = vrot.lane.b32.xlu0 %v1174, 48
  %v1184 = vpop.permute.xlu0 %1183
  %1185 = vrot.lane.b32.xlu0 %v1165, 48
  %v1186 = vpop.permute.xlu0 %1185
  %1187 = vrot.lane.b32.xlu0 %v1175, 48
  %v1188 = vpop.permute.xlu0 %1187
  %1189 = vrot.lane.b32.xlu0 %v1166, 48
  %v1190 = vpop.permute.xlu0 %1189
  %1191 = vrot.lane.b32.xlu0 %v1176, 48
  %v1192 = vpop.permute.xlu0 %1191
  %1193 = vrot.lane.b32.xlu0 %v1167, 48
  %v1194 = vpop.permute.xlu0 %1193
  %vm1195 = vcmask 392192
  %v1196 = vsel %vm1195, %v1178, %v1180
  %v1197 = vsel %vm1195, %v1180, %v1182
  %v1198 = vsel %vm1195, %v1182, %v1184
  %v1199 = vsel %vm1195, %v1184, %v1186
  %v1200 = vsel %vm1195, %v1186, %v1188
  %v1201 = vsel %vm1195, %v1188, %v1190
  %v1202 = vsel %vm1195, %v1190, %v1192
  %v1203 = vsel %vm1195, %v1192, %v1194
  %1212 = vst [vmem:[#allocation2 + $0x280] sm:$0xf] %v1196
  %1213 = vst [vmem:[#allocation2 + $0x288] sm:$0xf] %v1197
  %1214 = vst [vmem:[#allocation2 + $0x290] sm:$0xf] %v1198
  %1215 = vst [vmem:[#allocation2 + $0x298] sm:$0xf] %v1199
  %1216 = vst [vmem:[#allocation2 + $0x2a0] sm:$0xf] %v1200
  %1217 = vst [vmem:[#allocation2 + $0x2a8] sm:$0xf] %v1201
  %1218 = vst [vmem:[#allocation2 + $0x2b0] sm:$0xf] %v1202
  %1219 = vst [vmem:[#allocation2 + $0x2b8] sm:$0xf] %v1203
  %v1220 = vld [vmem:[%s0] sm:$0xff]
  %v1221 = vld [vmem:[%s0 + $0x8] sm:$0xff]
  %v1222 = vld [vmem:[%s0 + $0x10] sm:$0xff]
  %v1223 = vld [vmem:[%s0 + $0x18] sm:$0xff]
  %v1224 = vld [vmem:[%s0 + $0x20] sm:$0xf]
  %v1230 = vcombine.low %v1220, %v1220
  %v1231 = vcombine.low %v1221, %v1221
  %v1232 = vcombine.low %v1222, %v1222
  %v1233 = vcombine.low %v1223, %v1223
  %v1234 = vcombine.low %v1224, %v1224
  %1235 = vrot.lane.b32.xlu0 %v1230, 47
  %v1236 = vpop.permute.xlu0 %1235
  %1237 = vrot.lane.b32.xlu0 %v1220, 47
  %v1238 = vpop.permute.xlu0 %1237
  %1239 = vrot.lane.b32.xlu0 %v1231, 47
  %v1240 = vpop.permute.xlu0 %1239
  %1241 = vrot.lane.b32.xlu0 %v1221, 47
  %v1242 = vpop.permute.xlu0 %1241
  %1243 = vrot.lane.b32.xlu0 %v1232, 47
  %v1244 = vpop.permute.xlu0 %1243
  %1245 = vrot.lane.b32.xlu0 %v1222, 47
  %v1246 = vpop.permute.xlu0 %1245
  %1247 = vrot.lane.b32.xlu0 %v1233, 47
  %v1248 = vpop.permute.xlu0 %1247
  %1249 = vrot.lane.b32.xlu0 %v1223, 47
  %v1250 = vpop.permute.xlu0 %1249
  %1251 = vrot.lane.b32.xlu0 %v1234, 47
  %v1252 = vpop.permute.xlu0 %1251
  %vm1253 = vcmask 384000
  %v1254 = vsel %vm1253, %v1236, %v1238
  %v1255 = vsel %vm1253, %v1238, %v1240
  %v1256 = vsel %vm1253, %v1240, %v1242
  %v1257 = vsel %vm1253, %v1242, %v1244
  %v1258 = vsel %vm1253, %v1244, %v1246
  %v1259 = vsel %vm1253, %v1246, %v1248
  %v1260 = vsel %vm1253, %v1248, %v1250
  %v1261 = vsel %vm1253, %v1250, %v1252
  %1270 = vst [vmem:[#allocation2 + $0x280] sm:$0xf0] %v1254
  %1271 = vst [vmem:[#allocation2 + $0x288] sm:$0xf0] %v1255
  %1272 = vst [vmem:[#allocation2 + $0x290] sm:$0xf0] %v1256
  %1273 = vst [vmem:[#allocation2 + $0x298] sm:$0xf0] %v1257
  %1274 = vst [vmem:[#allocation2 + $0x2a0] sm:$0xf0] %v1258
  %1275 = vst [vmem:[#allocation2 + $0x2a8] sm:$0xf0] %v1259
  %1276 = vst [vmem:[#allocation2 + $0x2b0] sm:$0xf0] %v1260
  %1277 = vst [vmem:[#allocation2 + $0x2b8] sm:$0xf0] %v1261
  %v1278 = vld [vmem:[%s0] sm:$0xff]
  %v1279 = vld [vmem:[%s0 + $0x8] sm:$0xff]
  %v1280 = vld [vmem:[%s0 + $0x10] sm:$0xff]
  %v1281 = vld [vmem:[%s0 + $0x18] sm:$0xff]
  %v1282 = vld [vmem:[%s0 + $0x20] sm:$0xf]
  %v1288 = vcombine.high %v1278, %v1278
  %v1289 = vcombine.high %v1279, %v1279
  %v1290 = vcombine.high %v1280, %v1280
  %v1291 = vcombine.high %v1281, %v1281
  %1292 = vrot.lane.b32.xlu0 %v1278, 46
  %v1293 = vpop.permute.xlu0 %1292
  %1294 = vrot.lane.b32.xlu0 %v1288, 46
  %v1295 = vpop.permute.xlu0 %1294
  %1296 = vrot.lane.b32.xlu0 %v1279, 46
  %v1297 = vpop.permute.xlu0 %1296
  %1298 = vrot.lane.b32.xlu0 %v1289, 46
  %v1299 = vpop.permute.xlu0 %1298
  %1300 = vrot.lane.b32.xlu0 %v1280, 46
  %v1301 = vpop.permute.xlu0 %1300
  %1302 = vrot.lane.b32.xlu0 %v1290, 46
  %v1303 = vpop.permute.xlu0 %1302
  %1304 = vrot.lane.b32.xlu0 %v1281, 46
  %v1305 = vpop.permute.xlu0 %1304
  %1306 = vrot.lane.b32.xlu0 %v1291, 46
  %v1307 = vpop.permute.xlu0 %1306
  %1308 = vrot.lane.b32.xlu0 %v1282, 46
  %v1309 = vpop.permute.xlu0 %1308
  %vm1310 = vcmask 375808
  %v1311 = vsel %vm1310, %v1293, %v1295
  %v1312 = vsel %vm1310, %v1295, %v1297
  %v1313 = vsel %vm1310, %v1297, %v1299
  %v1314 = vsel %vm1310, %v1299, %v1301
  %v1315 = vsel %vm1310, %v1301, %v1303
  %v1316 = vsel %vm1310, %v1303, %v1305
  %v1317 = vsel %vm1310, %v1305, %v1307
  %v1318 = vsel %vm1310, %v1307, %v1309
  %1327 = vst [vmem:[#allocation2 + $0x2c0] sm:$0xf] %v1311
  %1328 = vst [vmem:[#allocation2 + $0x2c8] sm:$0xf] %v1312
  %1329 = vst [vmem:[#allocation2 + $0x2d0] sm:$0xf] %v1313
  %1330 = vst [vmem:[#allocation2 + $0x2d8] sm:$0xf] %v1314
  %1331 = vst [vmem:[#allocation2 + $0x2e0] sm:$0xf] %v1315
  %1332 = vst [vmem:[#allocation2 + $0x2e8] sm:$0xf] %v1316
  %1333 = vst [vmem:[#allocation2 + $0x2f0] sm:$0xf] %v1317
  %1334 = vst [vmem:[#allocation2 + $0x2f8] sm:$0xf] %v1318
  %v1335 = vld [vmem:[%s0] sm:$0xff]
  %v1336 = vld [vmem:[%s0 + $0x8] sm:$0xff]
  %v1337 = vld [vmem:[%s0 + $0x10] sm:$0xff]
  %v1338 = vld [vmem:[%s0 + $0x18] sm:$0xff]
  %v1339 = vld [vmem:[%s0 + $0x20] sm:$0xf]
  %v1345 = vcombine.low %v1335, %v1335
  %v1346 = vcombine.low %v1336, %v1336
  %v1347 = vcombine.low %v1337, %v1337
  %v1348 = vcombine.low %v1338, %v1338
  %v1349 = vcombine.low %v1339, %v1339
  %1350 = vrot.lane.b32.xlu0 %v1345, 45
  %v1351 = vpop.permute.xlu0 %1350
  %1352 = vrot.lane.b32.xlu0 %v1335, 45
  %v1353 = vpop.permute.xlu0 %1352
  %1354 = vrot.lane.b32.xlu0 %v1346, 45
  %v1355 = vpop.permute.xlu0 %1354
  %1356 = vrot.lane.b32.xlu0 %v1336, 45
  %v1357 = vpop.permute.xlu0 %1356
  %1358 = vrot.lane.b32.xlu0 %v1347, 45
  %v1359 = vpop.permute.xlu0 %1358
  %1360 = vrot.lane.b32.xlu0 %v1337, 45
  %v1361 = vpop.permute.xlu0 %1360
  %1362 = vrot.lane.b32.xlu0 %v1348, 45
  %v1363 = vpop.permute.xlu0 %1362
  %1364 = vrot.lane.b32.xlu0 %v1338, 45
  %v1365 = vpop.permute.xlu0 %1364
  %1366 = vrot.lane.b32.xlu0 %v1349, 45
  %v1367 = vpop.permute.xlu0 %1366
  %vm1368 = vcmask 367616
  %v1369 = vsel %vm1368, %v1351, %v1353
  %v1370 = vsel %vm1368, %v1353, %v1355
  %v1371 = vsel %vm1368, %v1355, %v1357
  %v1372 = vsel %vm1368, %v1357, %v1359
  %v1373 = vsel %vm1368, %v1359, %v1361
  %v1374 = vsel %vm1368, %v1361, %v1363
  %v1375 = vsel %vm1368, %v1363, %v1365
  %v1376 = vsel %vm1368, %v1365, %v1367
  %1385 = vst [vmem:[#allocation2 + $0x2c0] sm:$0xf0] %v1369
  %1386 = vst [vmem:[#allocation2 + $0x2c8] sm:$0xf0] %v1370
  %1387 = vst [vmem:[#allocation2 + $0x2d0] sm:$0xf0] %v1371
  %1388 = vst [vmem:[#allocation2 + $0x2d8] sm:$0xf0] %v1372
  %1389 = vst [vmem:[#allocation2 + $0x2e0] sm:$0xf0] %v1373
  %1390 = vst [vmem:[#allocation2 + $0x2e8] sm:$0xf0] %v1374
  %1391 = vst [vmem:[#allocation2 + $0x2f0] sm:$0xf0] %v1375
  %1392 = vst [vmem:[#allocation2 + $0x2f8] sm:$0xf0] %v1376
  %v1393 = vld [vmem:[%s0] sm:$0xff]
  %v1394 = vld [vmem:[%s0 + $0x8] sm:$0xff]
  %v1395 = vld [vmem:[%s0 + $0x10] sm:$0xff]
  %v1396 = vld [vmem:[%s0 + $0x18] sm:$0xff]
  %v1397 = vld [vmem:[%s0 + $0x20] sm:$0xf]
  %v1403 = vcombine.high %v1393, %v1393
  %v1404 = vcombine.high %v1394, %v1394
  %v1405 = vcombine.high %v1395, %v1395
  %v1406 = vcombine.high %v1396, %v1396
  %1407 = vrot.lane.b32.xlu0 %v1393, 44
  %v1408 = vpop.permute.xlu0 %1407
  %1409 = vrot.lane.b32.xlu0 %v1403, 44
  %v1410 = vpop.permute.xlu0 %1409
  %1411 = vrot.lane.b32.xlu0 %v1394, 44
  %v1412 = vpop.permute.xlu0 %1411
  %1413 = vrot.lane.b32.xlu0 %v1404, 44
  %v1414 = vpop.permute.xlu0 %1413
  %1415 = vrot.lane.b32.xlu0 %v1395, 44
  %v1416 = vpop.permute.xlu0 %1415
  %1417 = vrot.lane.b32.xlu0 %v1405, 44
  %v1418 = vpop.permute.xlu0 %1417
  %1419 = vrot.lane.b32.xlu0 %v1396, 44
  %v1420 = vpop.permute.xlu0 %1419
  %1421 = vrot.lane.b32.xlu0 %v1406, 44
  %v1422 = vpop.permute.xlu0 %1421
  %1423 = vrot.lane.b32.xlu0 %v1397, 44
  %v1424 = vpop.permute.xlu0 %1423
  %vm1425 = vcmask 359424
  %v1426 = vsel %vm1425, %v1408, %v1410
  %v1427 = vsel %vm1425, %v1410, %v1412
  %v1428 = vsel %vm1425, %v1412, %v1414
  %v1429 = vsel %vm1425, %v1414, %v1416
  %v1430 = vsel %vm1425, %v1416, %v1418
  %v1431 = vsel %vm1425, %v1418, %v1420
  %v1432 = vsel %vm1425, %v1420, %v1422
  %v1433 = vsel %vm1425, %v1422, %v1424
  %1442 = vst [vmem:[#allocation2 + $0x300] sm:$0xf] %v1426
  %1443 = vst [vmem:[#allocation2 + $0x308] sm:$0xf] %v1427
  %1444 = vst [vmem:[#allocation2 + $0x310] sm:$0xf] %v1428
  %1445 = vst [vmem:[#allocation2 + $0x318] sm:$0xf] %v1429
  %1446 = vst [vmem:[#allocation2 + $0x320] sm:$0xf] %v1430
  %1447 = vst [vmem:[#allocation2 + $0x328] sm:$0xf] %v1431
  %1448 = vst [vmem:[#allocation2 + $0x330] sm:$0xf] %v1432
  %1449 = vst [vmem:[#allocation2 + $0x338] sm:$0xf] %v1433
  %v1450 = vld [vmem:[%s1] sm:$0x7]
  %v1451 = vld [vmem:[#allocation2] sm:$0xff]
  %v1452 = vld [vmem:[#allocation2 + $0x8] sm:$0xff]
  %v1453 = vld [vmem:[#allocation2 + $0x10] sm:$0xff]
  %v1454 = vld [vmem:[#allocation2 + $0x18] sm:$0xff]
  %v1455 = vld [vmem:[#allocation2 + $0x20] sm:$0xff]
  %v1456 = vld [vmem:[#allocation2 + $0x28] sm:$0xff]
  %v1457 = vld [vmem:[#allocation2 + $0x30] sm:$0xff]
  %v1458 = vld [vmem:[#allocation2 + $0x38] sm:$0xff]
  %v1459 = vld [vmem:[#allocation2 + $0x40] sm:$0xff]
  %v1460 = vld [vmem:[#allocation2 + $0x48] sm:$0xff]
  %v1461 = vld [vmem:[#allocation2 + $0x50] sm:$0xff]
  %v1462 = vld [vmem:[#allocation2 + $0x58] sm:$0xff]
  %v1463 = vld [vmem:[#allocation2 + $0x60] sm:$0xff]
  %v1464 = vld [vmem:[#allocation2 + $0x68] sm:$0xff]
  %v1465 = vld [vmem:[#allocation2 + $0x70] sm:$0xff]
  %v1466 = vld [vmem:[#allocation2 + $0x78] sm:$0xff]
  %v1467 = vld [vmem:[#allocation2 + $0x80] sm:$0xff]
  %v1468 = vld [vmem:[#allocation2 + $0x88] sm:$0xff]
  %v1469 = vld [vmem:[#allocation2 + $0x90] sm:$0xff]
  %v1470 = vld [vmem:[#allocation2 + $0x98] sm:$0xff]
  %v1471 = vld [vmem:[#allocation2 + $0xa0] sm:$0xff]
  %v1472 = vld [vmem:[#allocation2 + $0xa8] sm:$0xff]
  %v1473 = vld [vmem:[#allocation2 + $0xb0] sm:$0xff]
  %v1474 = vld [vmem:[#allocation2 + $0xb8] sm:$0xff]
  %v1475 = vld [vmem:[#allocation2 + $0xc0] sm:$0xff]
  %v1476 = vld [vmem:[#allocation2 + $0xc8] sm:$0xff]
  %v1477 = vld [vmem:[#allocation2 + $0xd0] sm:$0xff]
  %v1478 = vld [vmem:[#allocation2 + $0xd8] sm:$0xff]
  %v1479 = vld [vmem:[#allocation2 + $0xe0] sm:$0xff]
  %v1480 = vld [vmem:[#allocation2 + $0xe8] sm:$0xff]
  %v1481 = vld [vmem:[#allocation2 + $0xf0] sm:$0xff]
  %v1482 = vld [vmem:[#allocation2 + $0xf8] sm:$0xff]
  %v1483 = vld [vmem:[#allocation2 + $0x100] sm:$0xff]
  %v1484 = vld [vmem:[#allocation2 + $0x108] sm:$0xff]
  %v1485 = vld [vmem:[#allocation2 + $0x110] sm:$0xff]
  %v1486 = vld [vmem:[#allocation2 + $0x118] sm:$0xff]
  %v1487 = vld [vmem:[#allocation2 + $0x120] sm:$0xff]
  %v1488 = vld [vmem:[#allocation2 + $0x128] sm:$0xff]
  %v1489 = vld [vmem:[#allocation2 + $0x130] sm:$0xff]
  %v1490 = vld [vmem:[#allocation2 + $0x138] sm:$0xff]
  %v1491 = vld [vmem:[#allocation2 + $0x140] sm:$0xff]
  %v1492 = vld [vmem:[#allocation2 + $0x148] sm:$0xff]
  %v1493 = vld [vmem:[#allocation2 + $0x150] sm:$0xff]
  %v1494 = vld [vmem:[#allocation2 + $0x158] sm:$0xff]
  %v1495 = vld [vmem:[#allocation2 + $0x160] sm:$0xff]
  %v1496 = vld [vmem:[#allocation2 + $0x168] sm:$0xff]
  %v1497 = vld [vmem:[#allocation2 + $0x170] sm:$0xff]
  %v1498 = vld [vmem:[#allocation2 + $0x178] sm:$0xff]
  %v1499 = vld [vmem:[#allocation2 + $0x180] sm:$0xff]
  %v1500 = vld [vmem:[#allocation2 + $0x188] sm:$0xff]
  %v1501 = vld [vmem:[#allocation2 + $0x190] sm:$0xff]
  %v1502 = vld [vmem:[#allocation2 + $0x198] sm:$0xff]
  %v1503 = vld [vmem:[#allocation2 + $0x1a0] sm:$0xff]
  %v1504 = vld [vmem:[#allocation2 + $0x1a8] sm:$0xff]
  %v1505 = vld [vmem:[#allocation2 + $0x1b0] sm:$0xff]
  %v1506 = vld [vmem:[#allocation2 + $0x1b8] sm:$0xff]
  %v1507 = vld [vmem:[#allocation2 + $0x1c0] sm:$0xff]
  %v1508 = vld [vmem:[#allocation2 + $0x1c8] sm:$0xff]
  %v1509 = vld [vmem:[#allocation2 + $0x1d0] sm:$0xff]
  %v1510 = vld [vmem:[#allocation2 + $0x1d8] sm:$0xff]
  %v1511 = vld [vmem:[#allocation2 + $0x1e0] sm:$0xff]
  %v1512 = vld [vmem:[#allocation2 + $0x1e8] sm:$0xff]
  %v1513 = vld [vmem:[#allocation2 + $0x1f0] sm:$0xff]
  %v1514 = vld [vmem:[#allocation2 + $0x1f8] sm:$0xff]
  %v1515 = vld [vmem:[#allocation2 + $0x200] sm:$0xff]
  %v1516 = vld [vmem:[#allocation2 + $0x208] sm:$0xff]
  %v1517 = vld [vmem:[#allocation2 + $0x210] sm:$0xff]
  %v1518 = vld [vmem:[#allocation2 + $0x218] sm:$0xff]
  %v1519 = vld [vmem:[#allocation2 + $0x220] sm:$0xff]
  %v1520 = vld [vmem:[#allocation2 + $0x228] sm:$0xff]
  %v1521 = vld [vmem:[#allocation2 + $0x230] sm:$0xff]
  %v1522 = vld [vmem:[#allocation2 + $0x238] sm:$0xff]
  %v1523 = vld [vmem:[#allocation2 + $0x240] sm:$0xff]
  %v1524 = vld [vmem:[#allocation2 + $0x248] sm:$0xff]
  %v1525 = vld [vmem:[#allocation2 + $0x250] sm:$0xff]
  %v1526 = vld [vmem:[#allocation2 + $0x258] sm:$0xff]
  %v1527 = vld [vmem:[#allocation2 + $0x260] sm:$0xff]
  %v1528 = vld [vmem:[#allocation2 + $0x268] sm:$0xff]
  %v1529 = vld [vmem:[#allocation2 + $0x270] sm:$0xff]
  %v1530 = vld [vmem:[#allocation2 + $0x278] sm:$0xff]
  %v1531 = vld [vmem:[#allocation2 + $0x280] sm:$0xff]
  %v1532 = vld [vmem:[#allocation2 + $0x288] sm:$0xff]
  %v1533 = vld [vmem:[#allocation2 + $0x290] sm:$0xff]
  %v1534 = vld [vmem:[#allocation2 + $0x298] sm:$0xff]
  %v1535 = vld [vmem:[#allocation2 + $0x2a0] sm:$0xff]
  %v1536 = vld [vmem:[#allocation2 + $0x2a8] sm:$0xff]
  %v1537 = vld [vmem:[#allocation2 + $0x2b0] sm:$0xff]
  %v1538 = vld [vmem:[#allocation2 + $0x2b8] sm:$0xff]
  %v1539 = vld [vmem:[#allocation2 + $0x2c0] sm:$0xff]
  %v1540 = vld [vmem:[#allocation2 + $0x2c8] sm:$0xff]
  %v1541 = vld [vmem:[#allocation2 + $0x2d0] sm:$0xff]
  %v1542 = vld [vmem:[#allocation2 + $0x2d8] sm:$0xff]
  %v1543 = vld [vmem:[#allocation2 + $0x2e0] sm:$0xff]
  %v1544 = vld [vmem:[#allocation2 + $0x2e8] sm:$0xff]
  %v1545 = vld [vmem:[#allocation2 + $0x2f0] sm:$0xff]
  %v1546 = vld [vmem:[#allocation2 + $0x2f8] sm:$0xff]
  %v1547 = vld [vmem:[#allocation2 + $0x300] sm:$0xff]
  %v1548 = vld [vmem:[#allocation2 + $0x308] sm:$0xff]
  %v1549 = vld [vmem:[#allocation2 + $0x310] sm:$0xff]
  %v1550 = vld [vmem:[#allocation2 + $0x318] sm:$0xff]
  %v1551 = vld [vmem:[#allocation2 + $0x320] sm:$0xff]
  %v1552 = vld [vmem:[#allocation2 + $0x328] sm:$0xff]
  %v1553 = vld [vmem:[#allocation2 + $0x330] sm:$0xff]
  %v1554 = vld [vmem:[#allocation2 + $0x338] sm:$0xff]
  %v1555 = vld [vmem:[#allocation2 + $0x340] sm:$0xff]
  %v1556 = vld [vmem:[#allocation2 + $0x348] sm:$0xff]
  %v1557 = vld [vmem:[#allocation2 + $0x350] sm:$0xff]
  %v1558 = vld [vmem:[#allocation2 + $0x358] sm:$0xff]
  %v1559 = vld [vmem:[#allocation2 + $0x360] sm:$0xff]
  %v1560 = vld [vmem:[#allocation2 + $0x368] sm:$0xff]
  %v1561 = vld [vmem:[#allocation2 + $0x370] sm:$0xff]
  %v1562 = vld [vmem:[#allocation2 + $0x378] sm:$0xff]
  %v1563 = vld [vmem:[#allocation2 + $0x380] sm:$0xff]
  %v1564 = vld [vmem:[#allocation2 + $0x388] sm:$0xff]
  %v1565 = vld [vmem:[#allocation2 + $0x390] sm:$0xff]
  %v1566 = vld [vmem:[#allocation2 + $0x398] sm:$0xff]
  %v1567 = vld [vmem:[#allocation2 + $0x3a0] sm:$0xff]
  %v1568 = vld [vmem:[#allocation2 + $0x3a8] sm:$0xff]
  %v1569 = vld [vmem:[#allocation2 + $0x3b0] sm:$0xff]
  %v1570 = vld [vmem:[#allocation2 + $0x3b8] sm:$0xff]
  %v1571 = vld [vmem:[#allocation2 + $0x3c0] sm:$0xff]
  %v1572 = vld [vmem:[#allocation2 + $0x3c8] sm:$0xff]
  %v1573 = vld [vmem:[#allocation2 + $0x3d0] sm:$0xff]
  %v1574 = vld [vmem:[#allocation2 + $0x3d8] sm:$0xff]
  %v1575 = vld [vmem:[#allocation2 + $0x3e0] sm:$0xff]
  %v1576 = vld [vmem:[#allocation2 + $0x3e8] sm:$0xff]
  %v1577 = vld [vmem:[#allocation2 + $0x3f0] sm:$0xff]
  %v1578 = vld [vmem:[#allocation2 + $0x3f8] sm:$0xff]
  %1579 = vmatprep.subr.mxu0 %v1572
  %1580 = vmatpush1.msra.mxu0 %v1571
  %1581 = vmatprep.subr.mxu0 %v1564
  %1582 = vmatpush1.msra.mxu0 %v1563
  %1583 = vmatprep.subr.mxu0 %v1556
  %1584 = vmatpush1.msra.mxu0 %v1555
  %1585 = vmatprep.subr.mxu0 %v1548
  %1586 = vmatpush1.msra.mxu0 %v1547
  %1587 = vmatprep.subr.mxu0 %v1540
  %1588 = vmatpush1.msra.mxu0 %v1539
  %1589 = vmatprep.subr.mxu0 %v1532
  %1590 = vmatpush1.msra.mxu0 %v1531
  %1591 = vmatprep.subr.mxu0 %v1524
  %1592 = vmatpush1.msra.mxu0 %v1523
  %1593 = vmatprep.subr.mxu0 %v1516
  %1594 = vmatpush1.msra.mxu0 %v1515
  %1595 = vmatprep.subr.mxu0 %v1508
  %1596 = vmatpush1.msra.mxu0 %v1507
  %1597 = vmatprep.subr.mxu0 %v1500
  %1598 = vmatpush1.msra.mxu0 %v1499
  %1599 = vmatprep.subr.mxu0 %v1492
  %1600 = vmatpush1.msra.mxu0 %v1491
  %1601 = vmatprep.subr.mxu0 %v1484
  %1602 = vmatpush1.msra.mxu0 %v1483
  %1603 = vmatprep.subr.mxu0 %v1476
  %1604 = vmatpush1.msra.mxu0 %v1475
  %1605 = vmatprep.subr.mxu0 %v1468
  %1606 = vmatpush1.msra.mxu0 %v1467
  %1607 = vmatprep.subr.mxu0 %v1460
  %1608 = vmatpush1.msra.mxu0 %v1459
  %1609 = vmatprep.subr.mxu0 %v1452
  %1610 = vmatpush1.msra.mxu0 %v1451
  %1611 = vmatprep.subr.mxu0 0.0
  %1612 = vmatpush2.msra.mxu0 0.0
  %1613 = vmatprep.subr.mxu0 0.0
  %1614 = vmatpush2.msra.mxu0 0.0
  %1615 = vmatprep.subr.mxu0 0.0
  %1616 = vmatpush2.msra.mxu0 0.0
  %1617 = vmatprep.subr.mxu0 0.0
  %1618 = vmatpush2.msra.mxu0 0.0
  %1619 = vmatprep.subr.mxu0 0.0
  %1620 = vmatpush2.msra.mxu0 0.0
  %1621 = vmatprep.subr.mxu0 0.0
  %1622 = vmatpush2.msra.mxu0 0.0
  %1623 = vmatprep.subr.mxu0 0.0
  %1624 = vmatpush2.msra.mxu0 0.0
  %1625 = vmatprep.subr.mxu0 0.0
  %1626 = vmatpush2.msra.mxu0 0.0
  %1627 = vmatprep.subr.mxu0 0.0
  %1628 = vmatpush2.msra.mxu0 0.0
  %1629 = vmatprep.subr.mxu0 0.0
  %1630 = vmatpush2.msra.mxu0 0.0
  %1631 = vmatprep.subr.mxu0 0.0
  %1632 = vmatpush2.msra.mxu0 0.0
  %1633 = vmatprep.subr.mxu0 0.0
  %1634 = vmatpush2.msra.mxu0 0.0
  %1635 = vmatprep.subr.mxu0 0.0
  %1636 = vmatpush2.msra.mxu0 0.0
  %1637 = vmatprep.subr.mxu0 0.0
  %1638 = vmatpush2.msra.mxu0 0.0
  %1639 = vmatprep.subr.mxu0 0.0
  %1640 = vmatpush2.msra.mxu0 0.0
  %1641 = vmatprep.subr.mxu0 0.0
  %1642 = vmatpush2.msra.mxu0 0.0
  %1643 = vmatprep.mubr.f32.mxu0 0.0
  %1644 = vmatmul.mubr.f32.gmra.mxu0 %v1450
  %v1645 = vpop.f32.mrf.mxu0
  %v1646 = vadd.f32 0.0, %v1645
  %v1647 = vpop.f32.mrf.mxu0
  %v1648 = vadd.f32 0.0, %v1647
  %1649 = vdwg.mxu0
  %1650 = vmatprep.subr.mxu0 %v1574
  %1651 = vmatpush1.msra.mxu0 %v1573
  %1652 = vmatprep.subr.mxu0 %v1566
  %1653 = vmatpush1.msra.mxu0 %v1565
  %1654 = vmatprep.subr.mxu0 %v1558
  %1655 = vmatpush1.msra.mxu0 %v1557
  %1656 = vmatprep.subr.mxu0 %v1550
  %1657 = vmatpush1.msra.mxu0 %v1549
  %1658 = vmatprep.subr.mxu0 %v1542
  %1659 = vmatpush1.msra.mxu0 %v1541
  %1660 = vmatprep.subr.mxu0 %v1534
  %1661 = vmatpush1.msra.mxu0 %v1533
  %1662 = vmatprep.subr.mxu0 %v1526
  %1663 = vmatpush1.msra.mxu0 %v1525
  %1664 = vmatprep.subr.mxu0 %v1518
  %1665 = vmatpush1.msra.mxu0 %v1517
  %1666 = vmatprep.subr.mxu0 %v1510
  %1667 = vmatpush1.msra.mxu0 %v1509
  %1668 = vmatprep.subr.mxu0 %v1502
  %1669 = vmatpush1.msra.mxu0 %v1501
  %1670 = vmatprep.subr.mxu0 %v1494
  %1671 = vmatpush1.msra.mxu0 %v1493
  %1672 = vmatprep.subr.mxu0 %v1486
  %1673 = vmatpush1.msra.mxu0 %v1485
  %1674 = vmatprep.subr.mxu0 %v1478
  %1675 = vmatpush1.msra.mxu0 %v1477
  %1676 = vmatprep.subr.mxu0 %v1470
  %1677 = vmatpush1.msra.mxu0 %v1469
  %1678 = vmatprep.subr.mxu0 %v1462
  %1679 = vmatpush1.msra.mxu0 %v1461
  %1680 = vmatprep.subr.mxu0 %v1454
  %1681 = vmatpush1.msra.mxu0 %v1453
  %1682 = vmatprep.subr.mxu0 0.0
  %1683 = vmatpush2.msra.mxu0 0.0
  %1684 = vmatprep.subr.mxu0 0.0
  %1685 = vmatpush2.msra.mxu0 0.0
  %1686 = vmatprep.subr.mxu0 0.0
  %1687 = vmatpush2.msra.mxu0 0.0
  %1688 = vmatprep.subr.mxu0 0.0
  %1689 = vmatpush2.msra.mxu0 0.0
  %1690 = vmatprep.subr.mxu0 0.0
  %1691 = vmatpush2.msra.mxu0 0.0
  %1692 = vmatprep.subr.mxu0 0.0
  %1693 = vmatpush2.msra.mxu0 0.0
  %1694 = vmatprep.subr.mxu0 0.0
  %1695 = vmatpush2.msra.mxu0 0.0
  %1696 = vmatprep.subr.mxu0 0.0
  %1697 = vmatpush2.msra.mxu0 0.0
  %1698 = vmatprep.subr.mxu0 0.0
  %1699 = vmatpush2.msra.mxu0 0.0
  %1700 = vmatprep.subr.mxu0 0.0
  %1701 = vmatpush2.msra.mxu0 0.0
  %1702 = vmatprep.subr.mxu0 0.0
  %1703 = vmatpush2.msra.mxu0 0.0
  %1704 = vmatprep.subr.mxu0 0.0
  %1705 = vmatpush2.msra.mxu0 0.0
  %1706 = vmatprep.subr.mxu0 0.0
  %1707 = vmatpush2.msra.mxu0 0.0
  %1708 = vmatprep.subr.mxu0 0.0
  %1709 = vmatpush2.msra.mxu0 0.0
  %1710 = vmatprep.subr.mxu0 0.0
  %1711 = vmatpush2.msra.mxu0 0.0
  %1712 = vmatprep.subr.mxu0 0.0
  %1713 = vmatpush2.msra.mxu0 0.0
  %1714 = vmatprep.mubr.f32.mxu0 0.0
  %1715 = vmatmul.mubr.f32.gmra.mxu0 %v1450
  %v1716 = vpop.f32.mrf.mxu0
  %v1717 = vadd.f32 0.0, %v1716
  %v1718 = vpop.f32.mrf.mxu0
  %v1719 = vadd.f32 0.0, %v1718
  %1720 = vdwg.mxu0
  %1721 = vmatprep.subr.mxu0 %v1576
  %1722 = vmatpush1.msra.mxu0 %v1575
  %1723 = vmatprep.subr.mxu0 %v1568
  %1724 = vmatpush1.msra.mxu0 %v1567
  %1725 = vmatprep.subr.mxu0 %v1560
  %1726 = vmatpush1.msra.mxu0 %v1559
  %1727 = vmatprep.subr.mxu0 %v1552
  %1728 = vmatpush1.msra.mxu0 %v1551
  %1729 = vmatprep.subr.mxu0 %v1544
  %1730 = vmatpush1.msra.mxu0 %v1543
  %1731 = vmatprep.subr.mxu0 %v1536
  %1732 = vmatpush1.msra.mxu0 %v1535
  %1733 = vmatprep.subr.mxu0 %v1528
  %1734 = vmatpush1.msra.mxu0 %v1527
  %1735 = vmatprep.subr.mxu0 %v1520
  %1736 = vmatpush1.msra.mxu0 %v1519
  %1737 = vmatprep.subr.mxu0 %v1512
  %1738 = vmatpush1.msra.mxu0 %v1511
  %1739 = vmatprep.subr.mxu0 %v1504
  %1740 = vmatpush1.msra.mxu0 %v1503
  %1741 = vmatprep.subr.mxu0 %v1496
  %1742 = vmatpush1.msra.mxu0 %v1495
  %1743 = vmatprep.subr.mxu0 %v1488
  %1744 = vmatpush1.msra.mxu0 %v1487
  %1745 = vmatprep.subr.mxu0 %v1480
  %1746 = vmatpush1.msra.mxu0 %v1479
  %1747 = vmatprep.subr.mxu0 %v1472
  %1748 = vmatpush1.msra.mxu0 %v1471
  %1749 = vmatprep.subr.mxu0 %v1464
  %1750 = vmatpush1.msra.mxu0 %v1463
  %1751 = vmatprep.subr.mxu0 %v1456
  %1752 = vmatpush1.msra.mxu0 %v1455
  %1753 = vmatprep.subr.mxu0 0.0
  %1754 = vmatpush2.msra.mxu0 0.0
  %1755 = vmatprep.subr.mxu0 0.0
  %1756 = vmatpush2.msra.mxu0 0.0
  %1757 = vmatprep.subr.mxu0 0.0
  %1758 = vmatpush2.msra.mxu0 0.0
  %1759 = vmatprep.subr.mxu0 0.0
  %1760 = vmatpush2.msra.mxu0 0.0
  %1761 = vmatprep.subr.mxu0 0.0
  %1762 = vmatpush2.msra.mxu0 0.0
  %1763 = vmatprep.subr.mxu0 0.0
  %1764 = vmatpush2.msra.mxu0 0.0
  %1765 = vmatprep.subr.mxu0 0.0
  %1766 = vmatpush2.msra.mxu0 0.0
  %1767 = vmatprep.subr.mxu0 0.0
  %1768 = vmatpush2.msra.mxu0 0.0
  %1769 = vmatprep.subr.mxu0 0.0
  %1770 = vmatpush2.msra.mxu0 0.0
  %1771 = vmatprep.subr.mxu0 0.0
  %1772 = vmatpush2.msra.mxu0 0.0
  %1773 = vmatprep.subr.mxu0 0.0
  %1774 = vmatpush2.msra.mxu0 0.0
  %1775 = vmatprep.subr.mxu0 0.0
  %1776 = vmatpush2.msra.mxu0 0.0
  %1777 = vmatprep.subr.mxu0 0.0
  %1778 = vmatpush2.msra.mxu0 0.0
  %1779 = vmatprep.subr.mxu0 0.0
  %1780 = vmatpush2.msra.mxu0 0.0
  %1781 = vmatprep.subr.mxu0 0.0
  %1782 = vmatpush2.msra.mxu0 0.0
  %1783 = vmatprep.subr.mxu0 0.0
  %1784 = vmatpush2.msra.mxu0 0.0
  %1785 = vmatprep.mubr.f32.mxu0 0.0
  %1786 = vmatmul.mubr.f32.gmra.mxu0 %v1450
  %v1787 = vpop.f32.mrf.mxu0
  %v1788 = vadd.f32 0.0, %v1787
  %v1789 = vpop.f32.mrf.mxu0
  %v1790 = vadd.f32 0.0, %v1789
  %1791 = vdwg.mxu0
  %1792 = vmatprep.subr.mxu0 %v1578
  %1793 = vmatpush1.msra.mxu0 %v1577
  %1794 = vmatprep.subr.mxu0 %v1570
  %1795 = vmatpush1.msra.mxu0 %v1569
  %1796 = vmatprep.subr.mxu0 %v1562
  %1797 = vmatpush1.msra.mxu0 %v1561
  %1798 = vmatprep.subr.mxu0 %v1554
  %1799 = vmatpush1.msra.mxu0 %v1553
  %1800 = vmatprep.subr.mxu0 %v1546
  %1801 = vmatpush1.msra.mxu0 %v1545
  %1802 = vmatprep.subr.mxu0 %v1538
  %1803 = vmatpush1.msra.mxu0 %v1537
  %1804 = vmatprep.subr.mxu0 %v1530
  %1805 = vmatpush1.msra.mxu0 %v1529
  %1806 = vmatprep.subr.mxu0 %v1522
  %1807 = vmatpush1.msra.mxu0 %v1521
  %1808 = vmatprep.subr.mxu0 %v1514
  %1809 = vmatpush1.msra.mxu0 %v1513
  %1810 = vmatprep.subr.mxu0 %v1506
  %1811 = vmatpush1.msra.mxu0 %v1505
  %1812 = vmatprep.subr.mxu0 %v1498
  %1813 = vmatpush1.msra.mxu0 %v1497
  %1814 = vmatprep.subr.mxu0 %v1490
  %1815 = vmatpush1.msra.mxu0 %v1489
  %1816 = vmatprep.subr.mxu0 %v1482
  %1817 = vmatpush1.msra.mxu0 %v1481
  %1818 = vmatprep.subr.mxu0 %v1474
  %1819 = vmatpush1.msra.mxu0 %v1473
  %1820 = vmatprep.subr.mxu0 %v1466
  %1821 = vmatpush1.msra.mxu0 %v1465
  %1822 = vmatprep.subr.mxu0 %v1458
  %1823 = vmatpush1.msra.mxu0 %v1457
  %1824 = vmatprep.subr.mxu0 0.0
  %1825 = vmatpush2.msra.mxu0 0.0
  %1826 = vmatprep.subr.mxu0 0.0
  %1827 = vmatpush2.msra.mxu0 0.0
  %1828 = vmatprep.subr.mxu0 0.0
  %1829 = vmatpush2.msra.mxu0 0.0
  %1830 = vmatprep.subr.mxu0 0.0
  %1831 = vmatpush2.msra.mxu0 0.0
  %1832 = vmatprep.subr.mxu0 0.0
  %1833 = vmatpush2.msra.mxu0 0.0
  %1834 = vmatprep.subr.mxu0 0.0
  %1835 = vmatpush2.msra.mxu0 0.0
  %1836 = vmatprep.subr.mxu0 0.0
  %1837 = vmatpush2.msra.mxu0 0.0
  %1838 = vmatprep.subr.mxu0 0.0
  %1839 = vmatpush2.msra.mxu0 0.0
  %1840 = vmatprep.subr.mxu0 0.0
  %1841 = vmatpush2.msra.mxu0 0.0
  %1842 = vmatprep.subr.mxu0 0.0
  %1843 = vmatpush2.msra.mxu0 0.0
  %1844 = vmatprep.subr.mxu0 0.0
  %1845 = vmatpush2.msra.mxu0 0.0
  %1846 = vmatprep.subr.mxu0 0.0
  %1847 = vmatpush2.msra.mxu0 0.0
  %1848 = vmatprep.subr.mxu0 0.0
  %1849 = vmatpush2.msra.mxu0 0.0
  %1850 = vmatprep.subr.mxu0 0.0
  %1851 = vmatpush2.msra.mxu0 0.0
  %1852 = vmatprep.subr.mxu0 0.0
  %1853 = vmatpush2.msra.mxu0 0.0
  %1854 = vmatprep.subr.mxu0 0.0
  %1855 = vmatpush2.msra.mxu0 0.0
  %1856 = vmatprep.mubr.f32.mxu0 0.0
  %1857 = vmatmul.mubr.f32.gmra.mxu0 %v1450
  %v1858 = vpop.f32.mrf.mxu0
  %v1859 = vadd.f32 0.0, %v1858
  %v1860 = vpop.f32.mrf.mxu0
  %v1861 = vadd.f32 0.0, %v1860
  %1862 = vdwg.mxu0
  %v1871 = vcombine.low %v1646, %v1648
  %v1872 = vcombine.low %v1717, %v1719
  %v1873 = vcombine.low %v1788, %v1790
  %v1874 = vcombine.low %v1859, %v1861
  %1879 = vst [vmem:[%s2] sm:$0x77] %v1871
  %1880 = vst [vmem:[%s2 + $0x8] sm:$0x77] %v1872
  %1881 = vst [vmem:[%s2 + $0x10] sm:$0x77] %v1873
  %1882 = vst [vmem:[%s2 + $0x18] sm:$0x77] %v1874
  // Predicated region
  $region10: #{rr_forward.1} parent=0 // pred_check
    _
  $region11: #{rr_forward.1} parent=0 // pred_check_branch
    %1884 = sbr.rel (0) target = $region13
  $region12: #{rr_forward.1} parent=0 // pred_region
    _
  $region13: #{rr_forward.1} parent=0 // pred_fallthru
    _
  // Predicated region
  $region14: #{rr_forward.1} parent=0 // pred_check
    _
  $region15: #{rr_forward.1} parent=0 // pred_check_branch
    %1886 = sbr.rel (0) target = $region17
  $region16: #{rr_forward.1} parent=0 // pred_region
    _
  $region17: #{rr_forward.1} parent=0 // pred_fallthru
    _

</llo_original>
